<compile_context>
chip_gen: v6e
topology: v6e:2x2x1
jax: 0.10.0
libtpu: 0.0.40
codegen_flags: <defaults>
</compile_context>

<pallas_src>
import math
import jax
import jax.numpy as jnp
from jax.experimental import pallas as pl
from jax.experimental.pallas import tpu as pltpu

# ------------------------- small RoBERTa-like config -------------------------
VOCAB_SIZE = 100
HIDDEN = 32
NUM_HEADS = 2
HEAD_DIM = HIDDEN // NUM_HEADS
NUM_LAYERS = 2
INTERMEDIATE = 64
MAX_POS = 40
NUM_LABELS = 5
PAD_TOKEN_ID = 1
LN_EPS = 1e-5
LANE = 128            # lane-padded classifier output width (unmasked stores)

BATCH = 2
SEQ = 8

_ATTN_SCALE = 1.0 / math.sqrt(HEAD_DIM)
_GELU_C = math.sqrt(2.0 / math.pi)


# ------------------------------ kernel helpers --------------------------------
def _layer_norm(x, g, b):
    mu = jnp.mean(x, axis=-1, keepdims=True)
    xc = x - mu
    var = jnp.mean(xc * xc, axis=-1, keepdims=True)
    return xc * jax.lax.rsqrt(var + LN_EPS) * g + b


def _gelu(x):
    # tanh-approx GELU.  # TODO(synk): HF RoBERTa uses erf-GELU.
    return 0.5 * x * (1.0 + jnp.tanh(_GELU_C * (x + 0.044715 * x * x * x)))


# ------------------------------ fused kernel ----------------------------------
def fused_forward_kernel(
    emb_ref, mask_ref, eln_g_ref, eln_b_ref,
    wqkv_ref, bqkv_ref, wo_ref, bo_ref, ln1_g_ref, ln1_b_ref,
    w1_ref, b1_ref, w2_ref, b2_ref, ln2_g_ref, ln2_b_ref,
    cls_w_ref, cls_b_ref, out_ref,
):
    """Entire encoder + classifier forward for one batch element (one grid step)."""
    x = emb_ref[0]                       # (S, H)
    add_mask = mask_ref[0]               # (1, S) key-side additive mask

    # embedding LayerNorm
    x = _layer_norm(x, eln_g_ref[...], eln_b_ref[...])

    for l in range(NUM_LAYERS):          # static unroll, weights indexed at trace time
        # ---- fused QKV projection: one MXU pass with N = 3*H ----
        qkv = jnp.dot(x, wqkv_ref[l], preferred_element_type=jnp.float32) + bqkv_ref[l]
        q = qkv[:, 0 * HIDDEN:1 * HIDDEN]
        k = qkv[:, 1 * HIDDEN:2 * HIDDEN]
        v = qkv[:, 2 * HIDDEN:3 * HIDDEN]

        # ---- multi-head attention (all heads inside this grid step) ----
        ctx_heads = []
        for h in range(NUM_HEADS):
            sl = slice(h * HEAD_DIM, (h + 1) * HEAD_DIM)
            qh, kh, vh = q[:, sl], k[:, sl], v[:, sl]
            # contraction on the last dim of both operands -> no explicit transpose
            s = jax.lax.dot_general(
                qh, kh, (((1,), (1,)), ((), ())),
                preferred_element_type=jnp.float32) * _ATTN_SCALE       # (S, S)
            s = s + add_mask                                            # broadcast over rows
            mx = jnp.max(s, axis=-1, keepdims=True)
            e = jnp.exp(s - mx)
            denom = jnp.sum(e, axis=-1, keepdims=True)
            p = e * pl.reciprocal(denom, approx=True)                   # EUP reciprocal
            ctx_heads.append(jnp.dot(p, vh, preferred_element_type=jnp.float32))
        ctx = jnp.concatenate(ctx_heads, axis=-1)                       # (S, H)

        attn_out = jnp.dot(ctx, wo_ref[l], preferred_element_type=jnp.float32) + bo_ref[l]
        x = _layer_norm(x + attn_out, ln1_g_ref[l], ln1_b_ref[l])

        # ---- feed-forward ----
        hmid = _gelu(jnp.dot(x, w1_ref[l], preferred_element_type=jnp.float32) + b1_ref[l])
        y = jnp.dot(hmid, w2_ref[l], preferred_element_type=jnp.float32) + b2_ref[l]
        x = _layer_norm(x + y, ln2_g_ref[l], ln2_b_ref[l])

    # ---- classifier: lane-padded to 128 so the store is unmasked ----
    logits = jnp.dot(x, cls_w_ref[...], preferred_element_type=jnp.float32) + cls_b_ref[...]
    out_ref[0] = logits


# ------------------------------ parameter init --------------------------------
def init_params(key):
    std = 0.02
    keys = iter(jax.random.split(key, 64))
    H, I, L = HIDDEN, INTERMEDIATE, NUM_LAYERS

    def dense(k, fan_in, fan_out):
        return jax.random.normal(k, (fan_in, fan_out), jnp.float32) * std

    params = {
        "word_emb": dense(next(keys), VOCAB_SIZE, H),
        "pos_emb": dense(next(keys), MAX_POS, H),
        "type_emb": dense(next(keys), 1, H),
        "emb_ln_g": jnp.ones((1, H), jnp.float32),
        "emb_ln_b": jnp.zeros((1, H), jnp.float32),
    }
    wqkv, wo, w1, w2 = [], [], [], []
    for _ in range(L):
        wq, wk, wv = dense(next(keys), H, H), dense(next(keys), H, H), dense(next(keys), H, H)
        wqkv.append(jnp.concatenate([wq, wk, wv], axis=1))      # fused (H, 3H)
        wo.append(dense(next(keys), H, H))
        w1.append(dense(next(keys), H, I))
        w2.append(dense(next(keys), I, H))
    params.update({
        "wqkv": jnp.stack(wqkv),                                # (L, H, 3H)
        "bqkv": jnp.zeros((L, 1, 3 * H), jnp.float32),
        "wo": jnp.stack(wo),                                    # (L, H, H)
        "bo": jnp.zeros((L, 1, H), jnp.float32),
        "ln1_g": jnp.ones((L, 1, H), jnp.float32),
        "ln1_b": jnp.zeros((L, 1, H), jnp.float32),
        "w1": jnp.stack(w1),                                    # (L, H, I)
        "b1": jnp.zeros((L, 1, I), jnp.float32),
        "w2": jnp.stack(w2),                                    # (L, I, H)
        "b2": jnp.zeros((L, 1, H), jnp.float32),
        "ln2_g": jnp.ones((L, 1, H), jnp.float32),
        "ln2_b": jnp.zeros((L, 1, H), jnp.float32),
    })
    cls_w = dense(next(keys), H, NUM_LABELS)
    params["cls_w_pad"] = jnp.zeros((H, LANE), jnp.float32).at[:, :NUM_LABELS].set(cls_w)
    params["cls_b_pad"] = jnp.zeros((1, LANE), jnp.float32)
    return params


# ------------------------------- forward pass ---------------------------------
def token_classification_forward(params, input_ids, attention_mask):
    B, S = input_ids.shape
    maskf = attention_mask.astype(jnp.float32)
    # RoBERTa-style position ids: cumsum of mask offset by padding_idx
    pos_ids = (jnp.cumsum(attention_mask, axis=1) * attention_mask) + PAD_TOKEN_ID
    # embedding gathers are data-dependent -> stay in XLA; everything else is fused
    emb = (params["word_emb"][input_ids]
           + params["pos_emb"][pos_ids]
           + params["type_emb"][0])                             # (B, S, H)
    add_mask = ((1.0 - maskf) * -1e9)[:, None, :]               # (B, 1, S)

    H, I, L = HIDDEN, INTERMEDIATE, NUM_LAYERS
    full2 = lambda shape: pl.BlockSpec(shape, lambda b: (0, 0))
    full3 = lambda shape: pl.BlockSpec(shape, lambda b: (0, 0, 0))

    logits_pad = pl.pallas_call(
        fused_forward_kernel,
        out_shape=jax.ShapeDtypeStruct((B, S, LANE), jnp.float32),
        grid=(B,),
        in_specs=[
            pl.BlockSpec((1, S, H), lambda b: (b, 0, 0)),       # embeddings
            pl.BlockSpec((1, 1, S), lambda b: (b, 0, 0)),       # additive key mask
            full2((1, H)), full2((1, H)),                       # embedding LN g/b
            full3((L, H, 3 * H)), full3((L, 1, 3 * H)),         # fused QKV w/b
            full3((L, H, H)), full3((L, 1, H)),                 # attn output proj w/b
            full3((L, 1, H)), full3((L, 1, H)),                 # LN1 g/b
            full3((L, H, I)), full3((L, 1, I)),                 # FFN in w/b
            full3((L, I, H)), full3((L, 1, H)),                 # FFN out w/b
            full3((L, 1, H)), full3((L, 1, H)),                 # LN2 g/b
            full2((H, LANE)), full2((1, LANE)),                 # classifier w/b (lane padded)
        ],
        out_specs=pl.BlockSpec((1, S, LANE), lambda b: (b, 0, 0)),
        compiler_params=pltpu.CompilerParams(
            dimension_semantics=("parallel",)),                 # batch across TCs on v7x
    )(emb, add_mask,
      params["emb_ln_g"], params["emb_ln_b"],
      params["wqkv"], params["bqkv"], params["wo"], params["bo"],
      params["ln1_g"], params["ln1_b"],
      params["w1"], params["b1"], params["w2"], params["b2"],
      params["ln2_g"], params["ln2_b"],
      params["cls_w_pad"], params["cls_b_pad"])

    return logits_pad[..., :NUM_LABELS]


# ------------------------------ pure-JAX reference -----------------------------
def _reference_forward(params, input_ids, attention_mask):
    B, S = input_ids.shape
    maskf = attention_mask.astype(jnp.float32)
    pos_ids = (jnp.cumsum(attention_mask, axis=1) * attention_mask) + PAD_TOKEN_ID
    x = (params["word_emb"][input_ids]
         + params["pos_emb"][pos_ids]
         + params["type_emb"][0])

    def ln(t, g, b):
        mu = jnp.mean(t, -1, keepdims=True)
        var = jnp.mean((t - mu) ** 2, -1, keepdims=True)
        return (t - mu) * jax.lax.rsqrt(var + LN_EPS) * g + b

    x = ln(x, params["emb_ln_g"][0], params["emb_ln_b"][0])
    add_mask = ((1.0 - maskf) * -1e9)[:, None, None, :]         # (B,1,1,S)
    for l in range(NUM_LAYERS):
        qkv = x @ params["wqkv"][l] + params["bqkv"][l]
        q, k, v = jnp.split(qkv, 3, axis=-1)

        def heads(t):
            return t.reshape(B, S, NUM_HEADS, HEAD_DIM).transpose(0, 2, 1, 3)

        qh, kh, vh = heads(q), heads(k), heads(v)
        s = jnp.einsum("bhqd,bhkd->bhqk", qh, kh) * _ATTN_SCALE + add_mask
        p = jax.nn.softmax(s, axis=-1)
        ctx = jnp.einsum("bhqk,bhkd->bhqd", p, vh).transpose(0, 2, 1, 3).reshape(B, S, HIDDEN)
        attn_out = ctx @ params["wo"][l] + params["bo"][l]
        x = ln(x + attn_out, params["ln1_g"][l, 0], params["ln1_b"][l, 0])
        hmid = _gelu(x @ params["w1"][l] + params["b1"][l])
        y = hmid @ params["w2"][l] + params["b2"][l]
        x = ln(x + y, params["ln2_g"][l, 0], params["ln2_b"][l, 0])
    return (x @ params["cls_w_pad"] + params["cls_b_pad"])[..., :NUM_LABELS]


# ------------------------------------ main -------------------------------------
if __name__ == "__main__":
    key = jax.random.PRNGKey(0)
    k_params, k_ids = jax.random.split(key)

    params = init_params(k_params)

    input_ids = jax.random.randint(k_ids, (BATCH, SEQ), 3, VOCAB_SIZE, dtype=jnp.int32)
    attention_mask = jnp.ones((BATCH, SEQ), dtype=jnp.int32)
    # pad out the last two tokens of the second example
    attention_mask = attention_mask.at[1, SEQ - 2:].set(0)
    input_ids = input_ids.at[1, SEQ - 2:].set(PAD_TOKEN_ID)

    logits = jax.jit(token_classification_forward)(params, input_ids, attention_mask)
    logits = jax.block_until_ready(logits)

    assert logits.shape == (BATCH, SEQ, NUM_LABELS)
    assert bool(jnp.all(jnp.isfinite(logits)))

    ref = _reference_forward(params, input_ids, attention_mask)
    assert bool(jnp.allclose(logits, ref, atol=1e-2, rtol=1e-2)), \
        float(jnp.max(jnp.abs(logits - ref)))

    print("KERNEL_OK")
</pallas_src>

<mosaic_0001>
module attributes {stable_mosaic.version = 11 : i64} {
  func.func @fused_forward_kernel(%arg0: i32, %arg1: memref<1x8x32xf32, #tpu.memory_space<vmem>>, %arg2: memref<1x1x8xf32, #tpu.memory_space<vmem>>, %arg3: memref<1x32xf32, #tpu.memory_space<vmem>>, %arg4: memref<1x32xf32, #tpu.memory_space<vmem>>, %arg5: memref<2x32x96xf32, #tpu.memory_space<vmem>>, %arg6: memref<2x1x96xf32, #tpu.memory_space<vmem>>, %arg7: memref<2x32x32xf32, #tpu.memory_space<vmem>>, %arg8: memref<2x1x32xf32, #tpu.memory_space<vmem>>, %arg9: memref<2x1x32xf32, #tpu.memory_space<vmem>>, %arg10: memref<2x1x32xf32, #tpu.memory_space<vmem>>, %arg11: memref<2x32x64xf32, #tpu.memory_space<vmem>>, %arg12: memref<2x1x64xf32, #tpu.memory_space<vmem>>, %arg13: memref<2x64x32xf32, #tpu.memory_space<vmem>>, %arg14: memref<2x1x32xf32, #tpu.memory_space<vmem>>, %arg15: memref<2x1x32xf32, #tpu.memory_space<vmem>>, %arg16: memref<2x1x32xf32, #tpu.memory_space<vmem>>, %arg17: memref<32x128xf32, #tpu.memory_space<vmem>>, %arg18: memref<1x128xf32, #tpu.memory_space<vmem>>, %arg19: memref<1x8x128xf32, #tpu.memory_space<vmem>>) attributes {dimension_semantics = [#tpu.dimension_semantics<parallel>], iteration_bounds = array<i64: 2>, scalar_prefetch = 0 : i64, scratch_operands = 0 : i64, tpu.core_type = #tpu.core_type<tc>, window_params = [{transform_indices = @transform_0, window_bounds = array<i64: 1, 8, 32>}, {transform_indices = @transform_1, window_bounds = array<i64: 1, 1, 8>}, {pipeline_mode = #tpu.pipeline_mode<synchronous>, transform_indices = @transform_2, window_bounds = array<i64: 1, 32>}, {pipeline_mode = #tpu.pipeline_mode<synchronous>, transform_indices = @transform_3, window_bounds = array<i64: 1, 32>}, {pipeline_mode = #tpu.pipeline_mode<synchronous>, transform_indices = @transform_4, window_bounds = array<i64: 2, 32, 96>}, {pipeline_mode = #tpu.pipeline_mode<synchronous>, transform_indices = @transform_5, window_bounds = array<i64: 2, 1, 96>}, {pipeline_mode = #tpu.pipeline_mode<synchronous>, transform_indices = @transform_6, window_bounds = array<i64: 2, 32, 32>}, {pipeline_mode = #tpu.pipeline_mode<synchronous>, transform_indices = @transform_7, window_bounds = array<i64: 2, 1, 32>}, {pipeline_mode = #tpu.pipeline_mode<synchronous>, transform_indices = @transform_8, window_bounds = array<i64: 2, 1, 32>}, {pipeline_mode = #tpu.pipeline_mode<synchronous>, transform_indices = @transform_9, window_bounds = array<i64: 2, 1, 32>}, {pipeline_mode = #tpu.pipeline_mode<synchronous>, transform_indices = @transform_10, window_bounds = array<i64: 2, 32, 64>}, {pipeline_mode = #tpu.pipeline_mode<synchronous>, transform_indices = @transform_11, window_bounds = array<i64: 2, 1, 64>}, {pipeline_mode = #tpu.pipeline_mode<synchronous>, transform_indices = @transform_12, window_bounds = array<i64: 2, 64, 32>}, {pipeline_mode = #tpu.pipeline_mode<synchronous>, transform_indices = @transform_13, window_bounds = array<i64: 2, 1, 32>}, {pipeline_mode = #tpu.pipeline_mode<synchronous>, transform_indices = @transform_14, window_bounds = array<i64: 2, 1, 32>}, {pipeline_mode = #tpu.pipeline_mode<synchronous>, transform_indices = @transform_15, window_bounds = array<i64: 2, 1, 32>}, {pipeline_mode = #tpu.pipeline_mode<synchronous>, transform_indices = @transform_16, window_bounds = array<i64: 32, 128>}, {pipeline_mode = #tpu.pipeline_mode<synchronous>, transform_indices = @transform_17, window_bounds = array<i64: 1, 128>}, {transform_indices = @transform_18, window_bounds = array<i64: 1, 8, 128>}]} {
    %c0 = arith.constant 0 : index
    %c0_0 = arith.constant 0 : index
    %c0_1 = arith.constant 0 : index
    %0 = vector.load %arg1[%c0, %c0_0, %c0_1] : memref<1x8x32xf32, #tpu.memory_space<vmem>>, vector<1x8x32xf32>
    %1 = vector.shape_cast %0 : vector<1x8x32xf32> to vector<8x32xf32>
    %c0_2 = arith.constant 0 : index
    %c0_3 = arith.constant 0 : index
    %c0_4 = arith.constant 0 : index
    %2 = vector.load %arg2[%c0_2, %c0_3, %c0_4] : memref<1x1x8xf32, #tpu.memory_space<vmem>>, vector<1x1x8xf32>
    %3 = vector.shape_cast %2 : vector<1x1x8xf32> to vector<1x8xf32>
    %c0_5 = arith.constant 0 : index
    %c0_6 = arith.constant 0 : index
    %4 = vector.load %arg3[%c0_5, %c0_6] : memref<1x32xf32, #tpu.memory_space<vmem>>, vector<1x32xf32>
    %c0_7 = arith.constant 0 : index
    %c0_8 = arith.constant 0 : index
    %5 = vector.load %arg4[%c0_7, %c0_8] : memref<1x32xf32, #tpu.memory_space<vmem>>, vector<1x32xf32>
    %cst = arith.constant dense<0.000000e+00> : vector<8xf32>
    %6 = vector.multi_reduction <add>, %1, %cst [1] : vector<8x32xf32> to vector<8xf32>
    %7 = vector.shape_cast %6 : vector<8xf32> to vector<8x1xf32>
    %cst_9 = arith.constant 3.200000e+01 : f32
    %8 = vector.broadcast %cst_9 : f32 to vector<8x1xf32>
    %9 = arith.divf %7, %8 : vector<8x1xf32>
    %10 = vector.broadcast %9 : vector<8x1xf32> to vector<8x32xf32>
    %11 = arith.subf %1, %10 : vector<8x32xf32>
    %12 = arith.mulf %11, %11 : vector<8x32xf32>
    %cst_10 = arith.constant dense<0.000000e+00> : vector<8xf32>
    %13 = vector.multi_reduction <add>, %12, %cst_10 [1] : vector<8x32xf32> to vector<8xf32>
    %14 = vector.shape_cast %13 : vector<8xf32> to vector<8x1xf32>
    %cst_11 = arith.constant 3.200000e+01 : f32
    %15 = vector.broadcast %cst_11 : f32 to vector<8x1xf32>
    %16 = arith.divf %14, %15 : vector<8x1xf32>
    %cst_12 = arith.constant 9.99999974E-6 : f32
    %17 = vector.broadcast %cst_12 : f32 to vector<8x1xf32>
    %18 = arith.addf %16, %17 : vector<8x1xf32>
    %19 = math.rsqrt %18 : vector<8x1xf32>
    %20 = vector.broadcast %19 : vector<8x1xf32> to vector<8x32xf32>
    %21 = arith.mulf %11, %20 : vector<8x32xf32>
    %22 = vector.broadcast %4 : vector<1x32xf32> to vector<8x32xf32>
    %23 = arith.mulf %21, %22 : vector<8x32xf32>
    %24 = vector.broadcast %5 : vector<1x32xf32> to vector<8x32xf32>
    %25 = arith.addf %23, %24 : vector<8x32xf32>
    %c0_13 = arith.constant 0 : index
    %c0_14 = arith.constant 0 : index
    %c0_15 = arith.constant 0 : index
    %26 = vector.load %arg5[%c0_13, %c0_14, %c0_15] : memref<2x32x96xf32, #tpu.memory_space<vmem>>, vector<1x32x96xf32>
    %27 = vector.shape_cast %26 : vector<1x32x96xf32> to vector<32x96xf32>
    %cst_16 = arith.constant dense<0.000000e+00> : vector<8x96xf32>
    %28 = tpu.matmul %25, %27, %cst_16 {dimension_numbers = #tpu.dot_dimension_numbers<[1], [0], [0], [1], [0, 0, 1, 1], [], []>} : vector<8x32xf32>, vector<32x96xf32>, vector<8x96xf32> -> vector<8x96xf32>
    %c0_17 = arith.constant 0 : index
    %c0_18 = arith.constant 0 : index
    %c0_19 = arith.constant 0 : index
    %29 = vector.load %arg6[%c0_17, %c0_18, %c0_19] : memref<2x1x96xf32, #tpu.memory_space<vmem>>, vector<1x1x96xf32>
    %30 = vector.shape_cast %29 : vector<1x1x96xf32> to vector<1x96xf32>
    %31 = vector.broadcast %30 : vector<1x96xf32> to vector<8x96xf32>
    %32 = arith.addf %28, %31 : vector<8x96xf32>
    %33 = vector.extract_strided_slice %32 {offsets = [0, 0], sizes = [8, 32], strides = [1, 1]} : vector<8x96xf32> to vector<8x32xf32>
    %34 = vector.extract_strided_slice %32 {offsets = [0, 32], sizes = [8, 32], strides = [1, 1]} : vector<8x96xf32> to vector<8x32xf32>
    %35 = vector.extract_strided_slice %32 {offsets = [0, 64], sizes = [8, 32], strides = [1, 1]} : vector<8x96xf32> to vector<8x32xf32>
    %36 = vector.extract_strided_slice %33 {offsets = [0, 0], sizes = [8, 16], strides = [1, 1]} : vector<8x32xf32> to vector<8x16xf32>
    %37 = vector.extract_strided_slice %34 {offsets = [0, 0], sizes = [8, 16], strides = [1, 1]} : vector<8x32xf32> to vector<8x16xf32>
    %38 = vector.extract_strided_slice %35 {offsets = [0, 0], sizes = [8, 16], strides = [1, 1]} : vector<8x32xf32> to vector<8x16xf32>
    %cst_20 = arith.constant dense<0.000000e+00> : vector<8x8xf32>
    %39 = tpu.matmul %36, %37, %cst_20 {dimension_numbers = #tpu.dot_dimension_numbers<[1], [1], [0], [0], [0, 0, 1, 0], [], []>} : vector<8x16xf32>, vector<8x16xf32>, vector<8x8xf32> -> vector<8x8xf32>
    %cst_21 = arith.constant 2.500000e-01 : f32
    %40 = vector.broadcast %cst_21 : f32 to vector<8x8xf32>
    %41 = arith.mulf %39, %40 : vector<8x8xf32>
    %42 = vector.broadcast %3 : vector<1x8xf32> to vector<8x8xf32>
    %43 = arith.addf %41, %42 : vector<8x8xf32>
    %cst_22 = arith.constant dense<0xFF800000> : vector<8xf32>
    %44 = vector.multi_reduction <maximumf>, %43, %cst_22 [1] : vector<8x8xf32> to vector<8xf32>
    %45 = vector.shape_cast %44 : vector<8xf32> to vector<8x1xf32>
    %46 = vector.broadcast %45 : vector<8x1xf32> to vector<8x8xf32>
    %47 = arith.subf %43, %46 : vector<8x8xf32>
    %48 = math.exp %47 : vector<8x8xf32>
    %cst_23 = arith.constant dense<0.000000e+00> : vector<8xf32>
    %49 = vector.multi_reduction <add>, %48, %cst_23 [1] : vector<8x8xf32> to vector<8xf32>
    %50 = vector.shape_cast %49 : vector<8xf32> to vector<8x1xf32>
    %51 = tpu.reciprocal %50 {approx = true} : vector<8x1xf32> -> vector<8x1xf32>
    %52 = vector.broadcast %51 : vector<8x1xf32> to vector<8x8xf32>
    %53 = arith.mulf %48, %52 : vector<8x8xf32>
    %cst_24 = arith.constant dense<0.000000e+00> : vector<8x16xf32>
    %54 = tpu.matmul %53, %38, %cst_24 {dimension_numbers = #tpu.dot_dimension_numbers<[1], [0], [0], [1], [0, 0, 1, 1], [], []>} : vector<8x8xf32>, vector<8x16xf32>, vector<8x16xf32> -> vector<8x16xf32>
    %55 = vector.extract_strided_slice %33 {offsets = [0, 16], sizes = [8, 16], strides = [1, 1]} : vector<8x32xf32> to vector<8x16xf32>
    %56 = vector.extract_strided_slice %34 {offsets = [0, 16], sizes = [8, 16], strides = [1, 1]} : vector<8x32xf32> to vector<8x16xf32>
    %57 = vector.extract_strided_slice %35 {offsets = [0, 16], sizes = [8, 16], strides = [1, 1]} : vector<8x32xf32> to vector<8x16xf32>
    %cst_25 = arith.constant dense<0.000000e+00> : vector<8x8xf32>
    %58 = tpu.matmul %55, %56, %cst_25 {dimension_numbers = #tpu.dot_dimension_numbers<[1], [1], [0], [0], [0, 0, 1, 0], [], []>} : vector<8x16xf32>, vector<8x16xf32>, vector<8x8xf32> -> vector<8x8xf32>
    %cst_26 = arith.constant 2.500000e-01 : f32
    %59 = vector.broadcast %cst_26 : f32 to vector<8x8xf32>
    %60 = arith.mulf %58, %59 : vector<8x8xf32>
    %61 = vector.broadcast %3 : vector<1x8xf32> to vector<8x8xf32>
    %62 = arith.addf %60, %61 : vector<8x8xf32>
    %cst_27 = arith.constant dense<0xFF800000> : vector<8xf32>
    %63 = vector.multi_reduction <maximumf>, %62, %cst_27 [1] : vector<8x8xf32> to vector<8xf32>
    %64 = vector.shape_cast %63 : vector<8xf32> to vector<8x1xf32>
    %65 = vector.broadcast %64 : vector<8x1xf32> to vector<8x8xf32>
    %66 = arith.subf %62, %65 : vector<8x8xf32>
    %67 = math.exp %66 : vector<8x8xf32>
    %cst_28 = arith.constant dense<0.000000e+00> : vector<8xf32>
    %68 = vector.multi_reduction <add>, %67, %cst_28 [1] : vector<8x8xf32> to vector<8xf32>
    %69 = vector.shape_cast %68 : vector<8xf32> to vector<8x1xf32>
    %70 = tpu.reciprocal %69 {approx = true} : vector<8x1xf32> -> vector<8x1xf32>
    %71 = vector.broadcast %70 : vector<8x1xf32> to vector<8x8xf32>
    %72 = arith.mulf %67, %71 : vector<8x8xf32>
    %cst_29 = arith.constant dense<0.000000e+00> : vector<8x16xf32>
    %73 = tpu.matmul %72, %57, %cst_29 {dimension_numbers = #tpu.dot_dimension_numbers<[1], [0], [0], [1], [0, 0, 1, 1], [], []>} : vector<8x8xf32>, vector<8x16xf32>, vector<8x16xf32> -> vector<8x16xf32>
    %74 = tpu.concatenate %54, %73 in 1 : vector<8x16xf32>, vector<8x16xf32> -> vector<8x32xf32>
    %c0_30 = arith.constant 0 : index
    %c0_31 = arith.constant 0 : index
    %c0_32 = arith.constant 0 : index
    %75 = vector.load %arg7[%c0_30, %c0_31, %c0_32] : memref<2x32x32xf32, #tpu.memory_space<vmem>>, vector<1x32x32xf32>
    %76 = vector.shape_cast %75 : vector<1x32x32xf32> to vector<32x32xf32>
    %cst_33 = arith.constant dense<0.000000e+00> : vector<8x32xf32>
    %77 = tpu.matmul %74, %76, %cst_33 {dimension_numbers = #tpu.dot_dimension_numbers<[1], [0], [0], [1], [0, 0, 1, 1], [], []>} : vector<8x32xf32>, vector<32x32xf32>, vector<8x32xf32> -> vector<8x32xf32>
    %c0_34 = arith.constant 0 : index
    %c0_35 = arith.constant 0 : index
    %c0_36 = arith.constant 0 : index
    %78 = vector.load %arg8[%c0_34, %c0_35, %c0_36] : memref<2x1x32xf32, #tpu.memory_space<vmem>>, vector<1x1x32xf32>
    %79 = vector.shape_cast %78 : vector<1x1x32xf32> to vector<1x32xf32>
    %80 = vector.broadcast %79 : vector<1x32xf32> to vector<8x32xf32>
    %81 = arith.addf %77, %80 : vector<8x32xf32>
    %82 = arith.addf %25, %81 : vector<8x32xf32>
    %c0_37 = arith.constant 0 : index
    %c0_38 = arith.constant 0 : index
    %c0_39 = arith.constant 0 : index
    %83 = vector.load %arg9[%c0_37, %c0_38, %c0_39] : memref<2x1x32xf32, #tpu.memory_space<vmem>>, vector<1x1x32xf32>
    %84 = vector.shape_cast %83 : vector<1x1x32xf32> to vector<1x32xf32>
    %c0_40 = arith.constant 0 : index
    %c0_41 = arith.constant 0 : index
    %c0_42 = arith.constant 0 : index
    %85 = vector.load %arg10[%c0_40, %c0_41, %c0_42] : memref<2x1x32xf32, #tpu.memory_space<vmem>>, vector<1x1x32xf32>
    %86 = vector.shape_cast %85 : vector<1x1x32xf32> to vector<1x32xf32>
    %cst_43 = arith.constant dense<0.000000e+00> : vector<8xf32>
    %87 = vector.multi_reduction <add>, %82, %cst_43 [1] : vector<8x32xf32> to vector<8xf32>
    %88 = vector.shape_cast %87 : vector<8xf32> to vector<8x1xf32>
    %cst_44 = arith.constant 3.200000e+01 : f32
    %89 = vector.broadcast %cst_44 : f32 to vector<8x1xf32>
    %90 = arith.divf %88, %89 : vector<8x1xf32>
    %91 = vector.broadcast %90 : vector<8x1xf32> to vector<8x32xf32>
    %92 = arith.subf %82, %91 : vector<8x32xf32>
    %93 = arith.mulf %92, %92 : vector<8x32xf32>
    %cst_45 = arith.constant dense<0.000000e+00> : vector<8xf32>
    %94 = vector.multi_reduction <add>, %93, %cst_45 [1] : vector<8x32xf32> to vector<8xf32>
    %95 = vector.shape_cast %94 : vector<8xf32> to vector<8x1xf32>
    %cst_46 = arith.constant 3.200000e+01 : f32
    %96 = vector.broadcast %cst_46 : f32 to vector<8x1xf32>
    %97 = arith.divf %95, %96 : vector<8x1xf32>
    %cst_47 = arith.constant 9.99999974E-6 : f32
    %98 = vector.broadcast %cst_47 : f32 to vector<8x1xf32>
    %99 = arith.addf %97, %98 : vector<8x1xf32>
    %100 = math.rsqrt %99 : vector<8x1xf32>
    %101 = vector.broadcast %100 : vector<8x1xf32> to vector<8x32xf32>
    %102 = arith.mulf %92, %101 : vector<8x32xf32>
    %103 = vector.broadcast %84 : vector<1x32xf32> to vector<8x32xf32>
    %104 = arith.mulf %102, %103 : vector<8x32xf32>
    %105 = vector.broadcast %86 : vector<1x32xf32> to vector<8x32xf32>
    %106 = arith.addf %104, %105 : vector<8x32xf32>
    %c0_48 = arith.constant 0 : index
    %c0_49 = arith.constant 0 : index
    %c0_50 = arith.constant 0 : index
    %107 = vector.load %arg11[%c0_48, %c0_49, %c0_50] : memref<2x32x64xf32, #tpu.memory_space<vmem>>, vector<1x32x64xf32>
    %108 = vector.shape_cast %107 : vector<1x32x64xf32> to vector<32x64xf32>
    %cst_51 = arith.constant dense<0.000000e+00> : vector<8x64xf32>
    %109 = tpu.matmul %106, %108, %cst_51 {dimension_numbers = #tpu.dot_dimension_numbers<[1], [0], [0], [1], [0, 0, 1, 1], [], []>} : vector<8x32xf32>, vector<32x64xf32>, vector<8x64xf32> -> vector<8x64xf32>
    %c0_52 = arith.constant 0 : index
    %c0_53 = arith.constant 0 : index
    %c0_54 = arith.constant 0 : index
    %110 = vector.load %arg12[%c0_52, %c0_53, %c0_54] : memref<2x1x64xf32, #tpu.memory_space<vmem>>, vector<1x1x64xf32>
    %111 = vector.shape_cast %110 : vector<1x1x64xf32> to vector<1x64xf32>
    %112 = vector.broadcast %111 : vector<1x64xf32> to vector<8x64xf32>
    %113 = arith.addf %109, %112 : vector<8x64xf32>
    %cst_55 = arith.constant 5.000000e-01 : f32
    %114 = vector.broadcast %cst_55 : f32 to vector<8x64xf32>
    %115 = arith.mulf %114, %113 : vector<8x64xf32>
    %cst_56 = arith.constant 4.471500e-02 : f32
    %116 = vector.broadcast %cst_56 : f32 to vector<8x64xf32>
    %117 = arith.mulf %116, %113 : vector<8x64xf32>
    %118 = arith.mulf %117, %113 : vector<8x64xf32>
    %119 = arith.mulf %118, %113 : vector<8x64xf32>
    %120 = arith.addf %113, %119 : vector<8x64xf32>
    %cst_57 = arith.constant 0.797884583 : f32
    %121 = vector.broadcast %cst_57 : f32 to vector<8x64xf32>
    %122 = arith.mulf %121, %120 : vector<8x64xf32>
    %123 = math.tanh %122 : vector<8x64xf32>
    %cst_58 = arith.constant 1.000000e+00 : f32
    %124 = vector.broadcast %cst_58 : f32 to vector<8x64xf32>
    %125 = arith.addf %124, %123 : vector<8x64xf32>
    %126 = arith.mulf %115, %125 : vector<8x64xf32>
    %c0_59 = arith.constant 0 : index
    %c0_60 = arith.constant 0 : index
    %c0_61 = arith.constant 0 : index
    %127 = vector.load %arg13[%c0_59, %c0_60, %c0_61] : memref<2x64x32xf32, #tpu.memory_space<vmem>>, vector<1x64x32xf32>
    %128 = vector.shape_cast %127 : vector<1x64x32xf32> to vector<64x32xf32>
    %cst_62 = arith.constant dense<0.000000e+00> : vector<8x32xf32>
    %129 = tpu.matmul %126, %128, %cst_62 {dimension_numbers = #tpu.dot_dimension_numbers<[1], [0], [0], [1], [0, 0, 1, 1], [], []>} : vector<8x64xf32>, vector<64x32xf32>, vector<8x32xf32> -> vector<8x32xf32>
    %c0_63 = arith.constant 0 : index
    %c0_64 = arith.constant 0 : index
    %c0_65 = arith.constant 0 : index
    %130 = vector.load %arg14[%c0_63, %c0_64, %c0_65] : memref<2x1x32xf32, #tpu.memory_space<vmem>>, vector<1x1x32xf32>
    %131 = vector.shape_cast %130 : vector<1x1x32xf32> to vector<1x32xf32>
    %132 = vector.broadcast %131 : vector<1x32xf32> to vector<8x32xf32>
    %133 = arith.addf %129, %132 : vector<8x32xf32>
    %134 = arith.addf %106, %133 : vector<8x32xf32>
    %c0_66 = arith.constant 0 : index
    %c0_67 = arith.constant 0 : index
    %c0_68 = arith.constant 0 : index
    %135 = vector.load %arg15[%c0_66, %c0_67, %c0_68] : memref<2x1x32xf32, #tpu.memory_space<vmem>>, vector<1x1x32xf32>
    %136 = vector.shape_cast %135 : vector<1x1x32xf32> to vector<1x32xf32>
    %c0_69 = arith.constant 0 : index
    %c0_70 = arith.constant 0 : index
    %c0_71 = arith.constant 0 : index
    %137 = vector.load %arg16[%c0_69, %c0_70, %c0_71] : memref<2x1x32xf32, #tpu.memory_space<vmem>>, vector<1x1x32xf32>
    %138 = vector.shape_cast %137 : vector<1x1x32xf32> to vector<1x32xf32>
    %cst_72 = arith.constant dense<0.000000e+00> : vector<8xf32>
    %139 = vector.multi_reduction <add>, %134, %cst_72 [1] : vector<8x32xf32> to vector<8xf32>
    %140 = vector.shape_cast %139 : vector<8xf32> to vector<8x1xf32>
    %cst_73 = arith.constant 3.200000e+01 : f32
    %141 = vector.broadcast %cst_73 : f32 to vector<8x1xf32>
    %142 = arith.divf %140, %141 : vector<8x1xf32>
    %143 = vector.broadcast %142 : vector<8x1xf32> to vector<8x32xf32>
    %144 = arith.subf %134, %143 : vector<8x32xf32>
    %145 = arith.mulf %144, %144 : vector<8x32xf32>
    %cst_74 = arith.constant dense<0.000000e+00> : vector<8xf32>
    %146 = vector.multi_reduction <add>, %145, %cst_74 [1] : vector<8x32xf32> to vector<8xf32>
    %147 = vector.shape_cast %146 : vector<8xf32> to vector<8x1xf32>
    %cst_75 = arith.constant 3.200000e+01 : f32
    %148 = vector.broadcast %cst_75 : f32 to vector<8x1xf32>
    %149 = arith.divf %147, %148 : vector<8x1xf32>
    %cst_76 = arith.constant 9.99999974E-6 : f32
    %150 = vector.broadcast %cst_76 : f32 to vector<8x1xf32>
    %151 = arith.addf %149, %150 : vector<8x1xf32>
    %152 = math.rsqrt %151 : vector<8x1xf32>
    %153 = vector.broadcast %152 : vector<8x1xf32> to vector<8x32xf32>
    %154 = arith.mulf %144, %153 : vector<8x32xf32>
    %155 = vector.broadcast %136 : vector<1x32xf32> to vector<8x32xf32>
    %156 = arith.mulf %154, %155 : vector<8x32xf32>
    %157 = vector.broadcast %138 : vector<1x32xf32> to vector<8x32xf32>
    %158 = arith.addf %156, %157 : vector<8x32xf32>
    %c1 = arith.constant 1 : index
    %c0_77 = arith.constant 0 : index
    %c0_78 = arith.constant 0 : index
    %159 = vector.load %arg5[%c1, %c0_77, %c0_78] : memref<2x32x96xf32, #tpu.memory_space<vmem>>, vector<1x32x96xf32>
    %160 = vector.shape_cast %159 : vector<1x32x96xf32> to vector<32x96xf32>
    %cst_79 = arith.constant dense<0.000000e+00> : vector<8x96xf32>
    %161 = tpu.matmul %158, %160, %cst_79 {dimension_numbers = #tpu.dot_dimension_numbers<[1], [0], [0], [1], [0, 0, 1, 1], [], []>} : vector<8x32xf32>, vector<32x96xf32>, vector<8x96xf32> -> vector<8x96xf32>
    %c1_80 = arith.constant 1 : index
    %c0_81 = arith.constant 0 : index
    %c0_82 = arith.constant 0 : index
    %162 = vector.load %arg6[%c1_80, %c0_81, %c0_82] : memref<2x1x96xf32, #tpu.memory_space<vmem>>, vector<1x1x96xf32>
    %163 = vector.shape_cast %162 : vector<1x1x96xf32> to vector<1x96xf32>
    %164 = vector.broadcast %163 : vector<1x96xf32> to vector<8x96xf32>
    %165 = arith.addf %161, %164 : vector<8x96xf32>
    %166 = vector.extract_strided_slice %165 {offsets = [0, 0], sizes = [8, 32], strides = [1, 1]} : vector<8x96xf32> to vector<8x32xf32>
    %167 = vector.extract_strided_slice %165 {offsets = [0, 32], sizes = [8, 32], strides = [1, 1]} : vector<8x96xf32> to vector<8x32xf32>
    %168 = vector.extract_strided_slice %165 {offsets = [0, 64], sizes = [8, 32], strides = [1, 1]} : vector<8x96xf32> to vector<8x32xf32>
    %169 = vector.extract_strided_slice %166 {offsets = [0, 0], sizes = [8, 16], strides = [1, 1]} : vector<8x32xf32> to vector<8x16xf32>
    %170 = vector.extract_strided_slice %167 {offsets = [0, 0], sizes = [8, 16], strides = [1, 1]} : vector<8x32xf32> to vector<8x16xf32>
    %171 = vector.extract_strided_slice %168 {offsets = [0, 0], sizes = [8, 16], strides = [1, 1]} : vector<8x32xf32> to vector<8x16xf32>
    %cst_83 = arith.constant dense<0.000000e+00> : vector<8x8xf32>
    %172 = tpu.matmul %169, %170, %cst_83 {dimension_numbers = #tpu.dot_dimension_numbers<[1], [1], [0], [0], [0, 0, 1, 0], [], []>} : vector<8x16xf32>, vector<8x16xf32>, vector<8x8xf32> -> vector<8x8xf32>
    %cst_84 = arith.constant 2.500000e-01 : f32
    %173 = vector.broadcast %cst_84 : f32 to vector<8x8xf32>
    %174 = arith.mulf %172, %173 : vector<8x8xf32>
    %175 = vector.broadcast %3 : vector<1x8xf32> to vector<8x8xf32>
    %176 = arith.addf %174, %175 : vector<8x8xf32>
    %cst_85 = arith.constant dense<0xFF800000> : vector<8xf32>
    %177 = vector.multi_reduction <maximumf>, %176, %cst_85 [1] : vector<8x8xf32> to vector<8xf32>
    %178 = vector.shape_cast %177 : vector<8xf32> to vector<8x1xf32>
    %179 = vector.broadcast %178 : vector<8x1xf32> to vector<8x8xf32>
    %180 = arith.subf %176, %179 : vector<8x8xf32>
    %181 = math.exp %180 : vector<8x8xf32>
    %cst_86 = arith.constant dense<0.000000e+00> : vector<8xf32>
    %182 = vector.multi_reduction <add>, %181, %cst_86 [1] : vector<8x8xf32> to vector<8xf32>
    %183 = vector.shape_cast %182 : vector<8xf32> to vector<8x1xf32>
    %184 = tpu.reciprocal %183 {approx = true} : vector<8x1xf32> -> vector<8x1xf32>
    %185 = vector.broadcast %184 : vector<8x1xf32> to vector<8x8xf32>
    %186 = arith.mulf %181, %185 : vector<8x8xf32>
    %cst_87 = arith.constant dense<0.000000e+00> : vector<8x16xf32>
    %187 = tpu.matmul %186, %171, %cst_87 {dimension_numbers = #tpu.dot_dimension_numbers<[1], [0], [0], [1], [0, 0, 1, 1], [], []>} : vector<8x8xf32>, vector<8x16xf32>, vector<8x16xf32> -> vector<8x16xf32>
    %188 = vector.extract_strided_slice %166 {offsets = [0, 16], sizes = [8, 16], strides = [1, 1]} : vector<8x32xf32> to vector<8x16xf32>
    %189 = vector.extract_strided_slice %167 {offsets = [0, 16], sizes = [8, 16], strides = [1, 1]} : vector<8x32xf32> to vector<8x16xf32>
    %190 = vector.extract_strided_slice %168 {offsets = [0, 16], sizes = [8, 16], strides = [1, 1]} : vector<8x32xf32> to vector<8x16xf32>
    %cst_88 = arith.constant dense<0.000000e+00> : vector<8x8xf32>
    %191 = tpu.matmul %188, %189, %cst_88 {dimension_numbers = #tpu.dot_dimension_numbers<[1], [1], [0], [0], [0, 0, 1, 0], [], []>} : vector<8x16xf32>, vector<8x16xf32>, vector<8x8xf32> -> vector<8x8xf32>
    %cst_89 = arith.constant 2.500000e-01 : f32
    %192 = vector.broadcast %cst_89 : f32 to vector<8x8xf32>
    %193 = arith.mulf %191, %192 : vector<8x8xf32>
    %194 = vector.broadcast %3 : vector<1x8xf32> to vector<8x8xf32>
    %195 = arith.addf %193, %194 : vector<8x8xf32>
    %cst_90 = arith.constant dense<0xFF800000> : vector<8xf32>
    %196 = vector.multi_reduction <maximumf>, %195, %cst_90 [1] : vector<8x8xf32> to vector<8xf32>
    %197 = vector.shape_cast %196 : vector<8xf32> to vector<8x1xf32>
    %198 = vector.broadcast %197 : vector<8x1xf32> to vector<8x8xf32>
    %199 = arith.subf %195, %198 : vector<8x8xf32>
    %200 = math.exp %199 : vector<8x8xf32>
    %cst_91 = arith.constant dense<0.000000e+00> : vector<8xf32>
    %201 = vector.multi_reduction <add>, %200, %cst_91 [1] : vector<8x8xf32> to vector<8xf32>
    %202 = vector.shape_cast %201 : vector<8xf32> to vector<8x1xf32>
    %203 = tpu.reciprocal %202 {approx = true} : vector<8x1xf32> -> vector<8x1xf32>
    %204 = vector.broadcast %203 : vector<8x1xf32> to vector<8x8xf32>
    %205 = arith.mulf %200, %204 : vector<8x8xf32>
    %cst_92 = arith.constant dense<0.000000e+00> : vector<8x16xf32>
    %206 = tpu.matmul %205, %190, %cst_92 {dimension_numbers = #tpu.dot_dimension_numbers<[1], [0], [0], [1], [0, 0, 1, 1], [], []>} : vector<8x8xf32>, vector<8x16xf32>, vector<8x16xf32> -> vector<8x16xf32>
    %207 = tpu.concatenate %187, %206 in 1 : vector<8x16xf32>, vector<8x16xf32> -> vector<8x32xf32>
    %c1_93 = arith.constant 1 : index
    %c0_94 = arith.constant 0 : index
    %c0_95 = arith.constant 0 : index
    %208 = vector.load %arg7[%c1_93, %c0_94, %c0_95] : memref<2x32x32xf32, #tpu.memory_space<vmem>>, vector<1x32x32xf32>
    %209 = vector.shape_cast %208 : vector<1x32x32xf32> to vector<32x32xf32>
    %cst_96 = arith.constant dense<0.000000e+00> : vector<8x32xf32>
    %210 = tpu.matmul %207, %209, %cst_96 {dimension_numbers = #tpu.dot_dimension_numbers<[1], [0], [0], [1], [0, 0, 1, 1], [], []>} : vector<8x32xf32>, vector<32x32xf32>, vector<8x32xf32> -> vector<8x32xf32>
    %c1_97 = arith.constant 1 : index
    %c0_98 = arith.constant 0 : index
    %c0_99 = arith.constant 0 : index
    %211 = vector.load %arg8[%c1_97, %c0_98, %c0_99] : memref<2x1x32xf32, #tpu.memory_space<vmem>>, vector<1x1x32xf32>
    %212 = vector.shape_cast %211 : vector<1x1x32xf32> to vector<1x32xf32>
    %213 = vector.broadcast %212 : vector<1x32xf32> to vector<8x32xf32>
    %214 = arith.addf %210, %213 : vector<8x32xf32>
    %215 = arith.addf %158, %214 : vector<8x32xf32>
    %c1_100 = arith.constant 1 : index
    %c0_101 = arith.constant 0 : index
    %c0_102 = arith.constant 0 : index
    %216 = vector.load %arg9[%c1_100, %c0_101, %c0_102] : memref<2x1x32xf32, #tpu.memory_space<vmem>>, vector<1x1x32xf32>
    %217 = vector.shape_cast %216 : vector<1x1x32xf32> to vector<1x32xf32>
    %c1_103 = arith.constant 1 : index
    %c0_104 = arith.constant 0 : index
    %c0_105 = arith.constant 0 : index
    %218 = vector.load %arg10[%c1_103, %c0_104, %c0_105] : memref<2x1x32xf32, #tpu.memory_space<vmem>>, vector<1x1x32xf32>
    %219 = vector.shape_cast %218 : vector<1x1x32xf32> to vector<1x32xf32>
    %cst_106 = arith.constant dense<0.000000e+00> : vector<8xf32>
    %220 = vector.multi_reduction <add>, %215, %cst_106 [1] : vector<8x32xf32> to vector<8xf32>
    %221 = vector.shape_cast %220 : vector<8xf32> to vector<8x1xf32>
    %cst_107 = arith.constant 3.200000e+01 : f32
    %222 = vector.broadcast %cst_107 : f32 to vector<8x1xf32>
    %223 = arith.divf %221, %222 : vector<8x1xf32>
    %224 = vector.broadcast %223 : vector<8x1xf32> to vector<8x32xf32>
    %225 = arith.subf %215, %224 : vector<8x32xf32>
    %226 = arith.mulf %225, %225 : vector<8x32xf32>
    %cst_108 = arith.constant dense<0.000000e+00> : vector<8xf32>
    %227 = vector.multi_reduction <add>, %226, %cst_108 [1] : vector<8x32xf32> to vector<8xf32>
    %228 = vector.shape_cast %227 : vector<8xf32> to vector<8x1xf32>
    %cst_109 = arith.constant 3.200000e+01 : f32
    %229 = vector.broadcast %cst_109 : f32 to vector<8x1xf32>
    %230 = arith.divf %228, %229 : vector<8x1xf32>
    %cst_110 = arith.constant 9.99999974E-6 : f32
    %231 = vector.broadcast %cst_110 : f32 to vector<8x1xf32>
    %232 = arith.addf %230, %231 : vector<8x1xf32>
    %233 = math.rsqrt %232 : vector<8x1xf32>
    %234 = vector.broadcast %233 : vector<8x1xf32> to vector<8x32xf32>
    %235 = arith.mulf %225, %234 : vector<8x32xf32>
    %236 = vector.broadcast %217 : vector<1x32xf32> to vector<8x32xf32>
    %237 = arith.mulf %235, %236 : vector<8x32xf32>
    %238 = vector.broadcast %219 : vector<1x32xf32> to vector<8x32xf32>
    %239 = arith.addf %237, %238 : vector<8x32xf32>
    %c1_111 = arith.constant 1 : index
    %c0_112 = arith.constant 0 : index
    %c0_113 = arith.constant 0 : index
    %240 = vector.load %arg11[%c1_111, %c0_112, %c0_113] : memref<2x32x64xf32, #tpu.memory_space<vmem>>, vector<1x32x64xf32>
    %241 = vector.shape_cast %240 : vector<1x32x64xf32> to vector<32x64xf32>
    %cst_114 = arith.constant dense<0.000000e+00> : vector<8x64xf32>
    %242 = tpu.matmul %239, %241, %cst_114 {dimension_numbers = #tpu.dot_dimension_numbers<[1], [0], [0], [1], [0, 0, 1, 1], [], []>} : vector<8x32xf32>, vector<32x64xf32>, vector<8x64xf32> -> vector<8x64xf32>
    %c1_115 = arith.constant 1 : index
    %c0_116 = arith.constant 0 : index
    %c0_117 = arith.constant 0 : index
    %243 = vector.load %arg12[%c1_115, %c0_116, %c0_117] : memref<2x1x64xf32, #tpu.memory_space<vmem>>, vector<1x1x64xf32>
    %244 = vector.shape_cast %243 : vector<1x1x64xf32> to vector<1x64xf32>
    %245 = vector.broadcast %244 : vector<1x64xf32> to vector<8x64xf32>
    %246 = arith.addf %242, %245 : vector<8x64xf32>
    %cst_118 = arith.constant 5.000000e-01 : f32
    %247 = vector.broadcast %cst_118 : f32 to vector<8x64xf32>
    %248 = arith.mulf %247, %246 : vector<8x64xf32>
    %cst_119 = arith.constant 4.471500e-02 : f32
    %249 = vector.broadcast %cst_119 : f32 to vector<8x64xf32>
    %250 = arith.mulf %249, %246 : vector<8x64xf32>
    %251 = arith.mulf %250, %246 : vector<8x64xf32>
    %252 = arith.mulf %251, %246 : vector<8x64xf32>
    %253 = arith.addf %246, %252 : vector<8x64xf32>
    %cst_120 = arith.constant 0.797884583 : f32
    %254 = vector.broadcast %cst_120 : f32 to vector<8x64xf32>
    %255 = arith.mulf %254, %253 : vector<8x64xf32>
    %256 = math.tanh %255 : vector<8x64xf32>
    %cst_121 = arith.constant 1.000000e+00 : f32
    %257 = vector.broadcast %cst_121 : f32 to vector<8x64xf32>
    %258 = arith.addf %257, %256 : vector<8x64xf32>
    %259 = arith.mulf %248, %258 : vector<8x64xf32>
    %c1_122 = arith.constant 1 : index
    %c0_123 = arith.constant 0 : index
    %c0_124 = arith.constant 0 : index
    %260 = vector.load %arg13[%c1_122, %c0_123, %c0_124] : memref<2x64x32xf32, #tpu.memory_space<vmem>>, vector<1x64x32xf32>
    %261 = vector.shape_cast %260 : vector<1x64x32xf32> to vector<64x32xf32>
    %cst_125 = arith.constant dense<0.000000e+00> : vector<8x32xf32>
    %262 = tpu.matmul %259, %261, %cst_125 {dimension_numbers = #tpu.dot_dimension_numbers<[1], [0], [0], [1], [0, 0, 1, 1], [], []>} : vector<8x64xf32>, vector<64x32xf32>, vector<8x32xf32> -> vector<8x32xf32>
    %c1_126 = arith.constant 1 : index
    %c0_127 = arith.constant 0 : index
    %c0_128 = arith.constant 0 : index
    %263 = vector.load %arg14[%c1_126, %c0_127, %c0_128] : memref<2x1x32xf32, #tpu.memory_space<vmem>>, vector<1x1x32xf32>
    %264 = vector.shape_cast %263 : vector<1x1x32xf32> to vector<1x32xf32>
    %265 = vector.broadcast %264 : vector<1x32xf32> to vector<8x32xf32>
    %266 = arith.addf %262, %265 : vector<8x32xf32>
    %267 = arith.addf %239, %266 : vector<8x32xf32>
    %c1_129 = arith.constant 1 : index
    %c0_130 = arith.constant 0 : index
    %c0_131 = arith.constant 0 : index
    %268 = vector.load %arg15[%c1_129, %c0_130, %c0_131] : memref<2x1x32xf32, #tpu.memory_space<vmem>>, vector<1x1x32xf32>
    %269 = vector.shape_cast %268 : vector<1x1x32xf32> to vector<1x32xf32>
    %c1_132 = arith.constant 1 : index
    %c0_133 = arith.constant 0 : index
    %c0_134 = arith.constant 0 : index
    %270 = vector.load %arg16[%c1_132, %c0_133, %c0_134] : memref<2x1x32xf32, #tpu.memory_space<vmem>>, vector<1x1x32xf32>
    %271 = vector.shape_cast %270 : vector<1x1x32xf32> to vector<1x32xf32>
    %cst_135 = arith.constant dense<0.000000e+00> : vector<8xf32>
    %272 = vector.multi_reduction <add>, %267, %cst_135 [1] : vector<8x32xf32> to vector<8xf32>
    %273 = vector.shape_cast %272 : vector<8xf32> to vector<8x1xf32>
    %cst_136 = arith.constant 3.200000e+01 : f32
    %274 = vector.broadcast %cst_136 : f32 to vector<8x1xf32>
    %275 = arith.divf %273, %274 : vector<8x1xf32>
    %276 = vector.broadcast %275 : vector<8x1xf32> to vector<8x32xf32>
    %277 = arith.subf %267, %276 : vector<8x32xf32>
    %278 = arith.mulf %277, %277 : vector<8x32xf32>
    %cst_137 = arith.constant dense<0.000000e+00> : vector<8xf32>
    %279 = vector.multi_reduction <add>, %278, %cst_137 [1] : vector<8x32xf32> to vector<8xf32>
    %280 = vector.shape_cast %279 : vector<8xf32> to vector<8x1xf32>
    %cst_138 = arith.constant 3.200000e+01 : f32
    %281 = vector.broadcast %cst_138 : f32 to vector<8x1xf32>
    %282 = arith.divf %280, %281 : vector<8x1xf32>
    %cst_139 = arith.constant 9.99999974E-6 : f32
    %283 = vector.broadcast %cst_139 : f32 to vector<8x1xf32>
    %284 = arith.addf %282, %283 : vector<8x1xf32>
    %285 = math.rsqrt %284 : vector<8x1xf32>
    %286 = vector.broadcast %285 : vector<8x1xf32> to vector<8x32xf32>
    %287 = arith.mulf %277, %286 : vector<8x32xf32>
    %288 = vector.broadcast %269 : vector<1x32xf32> to vector<8x32xf32>
    %289 = arith.mulf %287, %288 : vector<8x32xf32>
    %290 = vector.broadcast %271 : vector<1x32xf32> to vector<8x32xf32>
    %291 = arith.addf %289, %290 : vector<8x32xf32>
    %c0_140 = arith.constant 0 : index
    %c0_141 = arith.constant 0 : index
    %292 = vector.load %arg17[%c0_140, %c0_141] : memref<32x128xf32, #tpu.memory_space<vmem>>, vector<32x128xf32>
    %cst_142 = arith.constant dense<0.000000e+00> : vector<8x128xf32>
    %293 = tpu.matmul %291, %292, %cst_142 {dimension_numbers = #tpu.dot_dimension_numbers<[1], [0], [0], [1], [0, 0, 1, 1], [], []>} : vector<8x32xf32>, vector<32x128xf32>, vector<8x128xf32> -> vector<8x128xf32>
    %c0_143 = arith.constant 0 : index
    %c0_144 = arith.constant 0 : index
    %294 = vector.load %arg18[%c0_143, %c0_144] : memref<1x128xf32, #tpu.memory_space<vmem>>, vector<1x128xf32>
    %295 = vector.broadcast %294 : vector<1x128xf32> to vector<8x128xf32>
    %296 = arith.addf %293, %295 : vector<8x128xf32>
    %c0_145 = arith.constant 0 : index
    %c0_146 = arith.constant 0 : index
    %c0_147 = arith.constant 0 : index
    %297 = vector.load %arg19[%c0_145, %c0_146, %c0_147] : memref<1x8x128xf32, #tpu.memory_space<vmem>>, vector<1x8x128xf32>
    %298 = vector.shape_cast %297 : vector<1x8x128xf32> to vector<8x128xf32>
    %299 = vector.shape_cast %296 : vector<8x128xf32> to vector<1x8x128xf32>
    tpu.vector_store %arg19[%c0_145, %c0_146, %c0_147], %299 {strides = array<i32>} : memref<1x8x128xf32, #tpu.memory_space<vmem>>, vector<1x8x128xf32>,
    return
  }
  func.func @transform_0(%arg0: i32) -> (i32, i32, i32) {
    %c0_i32 = arith.constant 0 : i32
    %c0_i32_0 = arith.constant 0 : i32
    %c0_i32_1 = arith.constant 0 : i32
    return %arg0, %c0_i32, %c0_i32_0 : i32, i32, i32
  }
  func.func @transform_1(%arg0: i32) -> (i32, i32, i32) {
    %c0_i32 = arith.constant 0 : i32
    %c0_i32_0 = arith.constant 0 : i32
    %c0_i32_1 = arith.constant 0 : i32
    return %arg0, %c0_i32, %c0_i32_0 : i32, i32, i32
  }
  func.func @transform_2(%arg0: i32) -> (i32, i32) {
    %c0_i32 = arith.constant 0 : i32
    %c0_i32_0 = arith.constant 0 : i32
    %c0_i32_1 = arith.constant 0 : i32
    return %c0_i32, %c0_i32_0 : i32, i32
  }
  func.func @transform_3(%arg0: i32) -> (i32, i32) {
    %c0_i32 = arith.constant 0 : i32
    %c0_i32_0 = arith.constant 0 : i32
    %c0_i32_1 = arith.constant 0 : i32
    return %c0_i32, %c0_i32_0 : i32, i32
  }
  func.func @transform_4(%arg0: i32) -> (i32, i32, i32) {
    %c0_i32 = arith.constant 0 : i32
    %c0_i32_0 = arith.constant 0 : i32
    %c0_i32_1 = arith.constant 0 : i32
    %c0_i32_2 = arith.constant 0 : i32
    return %c0_i32, %c0_i32_0, %c0_i32_1 : i32, i32, i32
  }
  func.func @transform_5(%arg0: i32) -> (i32, i32, i32) {
    %c0_i32 = arith.constant 0 : i32
    %c0_i32_0 = arith.constant 0 : i32
    %c0_i32_1 = arith.constant 0 : i32
    %c0_i32_2 = arith.constant 0 : i32
    return %c0_i32, %c0_i32_0, %c0_i32_1 : i32, i32, i32
  }
  func.func @transform_6(%arg0: i32) -> (i32, i32, i32) {
    %c0_i32 = arith.constant 0 : i32
    %c0_i32_0 = arith.constant 0 : i32
    %c0_i32_1 = arith.constant 0 : i32
    %c0_i32_2 = arith.constant 0 : i32
    return %c0_i32, %c0_i32_0, %c0_i32_1 : i32, i32, i32
  }
  func.func @transform_7(%arg0: i32) -> (i32, i32, i32) {
    %c0_i32 = arith.constant 0 : i32
    %c0_i32_0 = arith.constant 0 : i32
    %c0_i32_1 = arith.constant 0 : i32
    %c0_i32_2 = arith.constant 0 : i32
    return %c0_i32, %c0_i32_0, %c0_i32_1 : i32, i32, i32
  }
  func.func @transform_8(%arg0: i32) -> (i32, i32, i32) {
    %c0_i32 = arith.constant 0 : i32
    %c0_i32_0 = arith.constant 0 : i32
    %c0_i32_1 = arith.constant 0 : i32
    %c0_i32_2 = arith.constant 0 : i32
    return %c0_i32, %c0_i32_0, %c0_i32_1 : i32, i32, i32
  }
  func.func @transform_9(%arg0: i32) -> (i32, i32, i32) {
    %c0_i32 = arith.constant 0 : i32
    %c0_i32_0 = arith.constant 0 : i32
    %c0_i32_1 = arith.constant 0 : i32
    %c0_i32_2 = arith.constant 0 : i32
    return %c0_i32, %c0_i32_0, %c0_i32_1 : i32, i32, i32
  }
  func.func @transform_10(%arg0: i32) -> (i32, i32, i32) {
    %c0_i32 = arith.constant 0 : i32
    %c0_i32_0 = arith.constant 0 : i32
    %c0_i32_1 = arith.constant 0 : i32
    %c0_i32_2 = arith.constant 0 : i32
    return %c0_i32, %c0_i32_0, %c0_i32_1 : i32, i32, i32
  }
  func.func @transform_11(%arg0: i32) -> (i32, i32, i32) {
    %c0_i32 = arith.constant 0 : i32
    %c0_i32_0 = arith.constant 0 : i32
    %c0_i32_1 = arith.constant 0 : i32
    %c0_i32_2 = arith.constant 0 : i32
    return %c0_i32, %c0_i32_0, %c0_i32_1 : i32, i32, i32
  }
  func.func @transform_12(%arg0: i32) -> (i32, i32, i32) {
    %c0_i32 = arith.constant 0 : i32
    %c0_i32_0 = arith.constant 0 : i32
    %c0_i32_1 = arith.constant 0 : i32
    %c0_i32_2 = arith.constant 0 : i32
    return %c0_i32, %c0_i32_0, %c0_i32_1 : i32, i32, i32
  }
  func.func @transform_13(%arg0: i32) -> (i32, i32, i32) {
    %c0_i32 = arith.constant 0 : i32
    %c0_i32_0 = arith.constant 0 : i32
    %c0_i32_1 = arith.constant 0 : i32
    %c0_i32_2 = arith.constant 0 : i32
    return %c0_i32, %c0_i32_0, %c0_i32_1 : i32, i32, i32
  }
  func.func @transform_14(%arg0: i32) -> (i32, i32, i32) {
    %c0_i32 = arith.constant 0 : i32
    %c0_i32_0 = arith.constant 0 : i32
    %c0_i32_1 = arith.constant 0 : i32
    %c0_i32_2 = arith.constant 0 : i32
    return %c0_i32, %c0_i32_0, %c0_i32_1 : i32, i32, i32
  }
  func.func @transform_15(%arg0: i32) -> (i32, i32, i32) {
    %c0_i32 = arith.constant 0 : i32
    %c0_i32_0 = arith.constant 0 : i32
    %c0_i32_1 = arith.constant 0 : i32
    %c0_i32_2 = arith.constant 0 : i32
    return %c0_i32, %c0_i32_0, %c0_i32_1 : i32, i32, i32
  }
  func.func @transform_16(%arg0: i32) -> (i32, i32) {
    %c0_i32 = arith.constant 0 : i32
    %c0_i32_0 = arith.constant 0 : i32
    %c0_i32_1 = arith.constant 0 : i32
    return %c0_i32, %c0_i32_0 : i32, i32
  }
  func.func @transform_17(%arg0: i32) -> (i32, i32) {
    %c0_i32 = arith.constant 0 : i32
    %c0_i32_0 = arith.constant 0 : i32
    %c0_i32_1 = arith.constant 0 : i32
    return %c0_i32, %c0_i32_0 : i32, i32
  }
  func.func @transform_18(%arg0: i32) -> (i32, i32, i32) {
    %c0_i32 = arith.constant 0 : i32
    %c0_i32_0 = arith.constant 0 : i32
    %c0_i32_1 = arith.constant 0 : i32
    return %arg0, %c0_i32, %c0_i32_0 : i32, i32, i32
  }
}

</mosaic_0001>

<llo_original>
// kernel: token_classification_forward.1
$region0: #{token_classification_forward.1}
  #allocation0 [shape = 'u32[]', space=smem, size = 0x4, offset = 0x4, fixed_abs, tag = 'smem constant byte address 0x4 - core index']
  #allocation1 [shape = 'u32[144,128]{1,0:T(1,128)}', space=vmem, size = 0x12000, scoped, tag = 'internal scratch']
  %s0 = inlined_call_operand.vmem [shape: f32[2,8,32], index: 0, kind: input, shape index: {}]
  %s1 = inlined_call_operand.vmem [shape: f32[2,1,8], index: 1, kind: input, shape index: {}]
  %s2 = inlined_call_operand.vmem [shape: f32[1,32], index: 2, kind: input, shape index: {}]
  %s3 = inlined_call_operand.vmem [shape: f32[1,32], index: 3, kind: input, shape index: {}]
  %s4 = inlined_call_operand.vmem [shape: f32[2,32,96], index: 4, kind: input, shape index: {}]
  %s5 = inlined_call_operand.vmem [shape: f32[2,1,96], index: 5, kind: input, shape index: {}]
  %s6 = inlined_call_operand.vmem [shape: f32[2,32,32], index: 6, kind: input, shape index: {}]
  %s7 = inlined_call_operand.vmem [shape: f32[2,1,32], index: 7, kind: input, shape index: {}]
  %s8 = inlined_call_operand.vmem [shape: f32[2,1,32], index: 8, kind: input, shape index: {}]
  %s9 = inlined_call_operand.vmem [shape: f32[2,1,32], index: 9, kind: input, shape index: {}]
  %s10 = inlined_call_operand.vmem [shape: f32[2,32,64], index: 10, kind: input, shape index: {}]
  %s11 = inlined_call_operand.vmem [shape: f32[2,1,64], index: 11, kind: input, shape index: {}]
  %s12 = inlined_call_operand.vmem [shape: f32[2,64,32], index: 12, kind: input, shape index: {}]
  %s13 = inlined_call_operand.vmem [shape: f32[2,1,32], index: 13, kind: input, shape index: {}]
  %s14 = inlined_call_operand.vmem [shape: f32[2,1,32], index: 14, kind: input, shape index: {}]
  %s15 = inlined_call_operand.vmem [shape: f32[2,1,32], index: 15, kind: input, shape index: {}]
  %s16 = inlined_call_operand.vmem [shape: f32[32,128], index: 16, kind: input, shape index: {}]
  %s17 = inlined_call_operand.vmem [shape: f32[1,128], index: 17, kind: input, shape index: {}]
  %s18 = inlined_call_operand.vmem [shape: f32[2,8,128], index: 18, kind: output, shape index: {}]
  %s19 = sld [smem:[#allocation0]]
  $region105: #{token_classification_forward.1} parent=0
    _
  %s21 = ssub.s32 1, %s19
  %s22 = scalar_select 0, %s21, %s19
  loop: start=0, step=1, limit=4
  $region2: #{token_classification_forward.1} parent=0 // loop_pre_header
    _
  $region3: #{token_classification_forward.1} parent=0 // loop_header
    %s24 = sphi 0, %s28
    %p25 = scmp.ge.s32.totalorder %s24, 4
    %s34 = sphi 0, %s36
    %s37 = sphi 0, %s34
    %s38 = sphi 0, %s37
    %s54 = sphi 0, %s38
    %s60 = sphi 0, %s62
    %s63 = sphi 0, %s60
    %s64 = sphi 0, %s63
    %s80 = sphi 0, %s64
    %s84 = sphi 0, %s84
    %s86 = sphi 0, %s84
    %s87 = sphi 0, %s86
    %s101 = sphi 0, %s87
    %s105 = sphi 0, %s105
    %s107 = sphi 0, %s105
    %s108 = sphi 0, %s107
    %s122 = sphi 0, %s108
    %s126 = sphi 0, %s126
    %s128 = sphi 0, %s126
    %s129 = sphi 0, %s128
    %s143 = sphi 0, %s129
    %s147 = sphi 0, %s147
    %s149 = sphi 0, %s147
    %s150 = sphi 0, %s149
    %s164 = sphi 0, %s150
    %s168 = sphi 0, %s168
    %s170 = sphi 0, %s168
    %s171 = sphi 0, %s170
    %s185 = sphi 0, %s171
    %s189 = sphi 0, %s189
    %s191 = sphi 0, %s189
    %s192 = sphi 0, %s191
    %s206 = sphi 0, %s192
    %s210 = sphi 0, %s210
    %s212 = sphi 0, %s210
    %s213 = sphi 0, %s212
    %s227 = sphi 0, %s213
    %s231 = sphi 0, %s231
    %s233 = sphi 0, %s231
    %s234 = sphi 0, %s233
    %s248 = sphi 0, %s234
    %s252 = sphi 0, %s252
    %s254 = sphi 0, %s252
    %s255 = sphi 0, %s254
    %s269 = sphi 0, %s255
    %s273 = sphi 0, %s273
    %s275 = sphi 0, %s273
    %s276 = sphi 0, %s275
    %s290 = sphi 0, %s276
    %s294 = sphi 0, %s294
    %s296 = sphi 0, %s294
    %s297 = sphi 0, %s296
    %s311 = sphi 0, %s297
    %s315 = sphi 0, %s315
    %s317 = sphi 0, %s315
    %s318 = sphi 0, %s317
    %s332 = sphi 0, %s318
    %s336 = sphi 0, %s336
    %s338 = sphi 0, %s336
    %s339 = sphi 0, %s338
    %s353 = sphi 0, %s339
    %s357 = sphi 0, %s357
    %s359 = sphi 0, %s357
    %s360 = sphi 0, %s359
    %s374 = sphi 0, %s360
    %s378 = sphi 0, %s378
    %s380 = sphi 0, %s378
    %s381 = sphi 0, %s380
    %s395 = sphi 0, %s381
    %s399 = sphi 0, %s399
    %s401 = sphi 0, %s399
    %s402 = sphi 0, %s401
    %s416 = sphi 0, %s402
    %s422 = sphi 0, %s424
    %s425 = sphi 0, %s422
    %s426 = sphi 0, %s425
    %s442 = sphi 0, %s426
  $region4: #{token_classification_forward.1} parent=0 // loop_header_branch
    %27 = sbr.rel (%p25) target = $region8
  $region5: #{token_classification_forward.1} parent=0 // loop_body
    %s29 = ssub.s32 %s24, 1
    %s30 = ssub.s32 %s24, 2
    %s31 = sadd.s32 %s24, 1
    %s32 = ssub.s32 %s24, %s31
    %p33 = scmp.eq.s32.totalorder %s32, 0
    %s35 = sadd.s32 %s34, 1
    %s36 = scalar_select %p33, %s34, %s35
    %p39 = pneg %p33
    %p40 = scmp.eq.s32.totalorder %s24, 1
    %p41 = por %p39, %p40
    %p42 = scmp.ne.s32.totalorder %s34, %s37
    %p43 = scmp.eq.s32.totalorder %s24, 0
    %p44 = por %p42, %p43
    %p45 = scmp.ne.s32.totalorder %s34, %s37
    %p46 = scmp.eq.s32.totalorder %s29, 1
    %p47 = por %p45, %p46
    %p48 = scmp.ne.s32.totalorder %s37, %s38
    %p49 = scmp.eq.s32.totalorder %s29, 0
    %p50 = por %p48, %p49
    %p51 = scmp.ne.s32.totalorder %s37, %s38
    %p52 = scmp.eq.s32.totalorder %s30, 1
    %p53 = por %p51, %p52
    %p55 = scmp.ne.s32.totalorder %s38, %s54
    %p56 = scmp.eq.s32.totalorder %s30, 0
    %p57 = por %p55, %p56
    %s58 = ssub.s32 %s24, %s31
    %p59 = scmp.eq.s32.totalorder %s58, 0
    %s61 = sadd.s32 %s60, 1
    %s62 = scalar_select %p59, %s60, %s61
    %p65 = pneg %p59
    %p66 = scmp.eq.s32.totalorder %s24, 1
    %p67 = por %p65, %p66
    %p68 = scmp.ne.s32.totalorder %s60, %s63
    %p69 = scmp.eq.s32.totalorder %s24, 0
    %p70 = por %p68, %p69
    %p71 = scmp.ne.s32.totalorder %s60, %s63
    %p72 = scmp.eq.s32.totalorder %s29, 1
    %p73 = por %p71, %p72
    %p74 = scmp.ne.s32.totalorder %s63, %s64
    %p75 = scmp.eq.s32.totalorder %s29, 0
    %p76 = por %p74, %p75
    %p77 = scmp.ne.s32.totalorder %s63, %s64
    %p78 = scmp.eq.s32.totalorder %s30, 1
    %p79 = por %p77, %p78
    %p81 = scmp.ne.s32.totalorder %s64, %s80
    %p82 = scmp.eq.s32.totalorder %s30, 0
    %p83 = por %p81, %p82
    %s85 = sadd.s32 %s84, 1
    %p88 = scmp.eq.s32.totalorder %s24, 1
    %p89 = scmp.ne.s32.totalorder %s84, %s86
    %p90 = scmp.eq.s32.totalorder %s24, 0
    %p91 = por %p89, %p90
    %p92 = scmp.ne.s32.totalorder %s84, %s86
    %p93 = scmp.eq.s32.totalorder %s29, 1
    %p94 = por %p92, %p93
    %p95 = scmp.ne.s32.totalorder %s86, %s87
    %p96 = scmp.eq.s32.totalorder %s29, 0
    %p97 = por %p95, %p96
    %p98 = scmp.ne.s32.totalorder %s86, %s87
    %p99 = scmp.eq.s32.totalorder %s30, 1
    %p100 = por %p98, %p99
    %p102 = scmp.ne.s32.totalorder %s87, %s101
    %p103 = scmp.eq.s32.totalorder %s30, 0
    %p104 = por %p102, %p103
    %s106 = sadd.s32 %s105, 1
    %p109 = scmp.eq.s32.totalorder %s24, 1
    %p110 = scmp.ne.s32.totalorder %s105, %s107
    %p111 = scmp.eq.s32.totalorder %s24, 0
    %p112 = por %p110, %p111
    %p113 = scmp.ne.s32.totalorder %s105, %s107
    %p114 = scmp.eq.s32.totalorder %s29, 1
    %p115 = por %p113, %p114
    %p116 = scmp.ne.s32.totalorder %s107, %s108
    %p117 = scmp.eq.s32.totalorder %s29, 0
    %p118 = por %p116, %p117
    %p119 = scmp.ne.s32.totalorder %s107, %s108
    %p120 = scmp.eq.s32.totalorder %s30, 1
    %p121 = por %p119, %p120
    %p123 = scmp.ne.s32.totalorder %s108, %s122
    %p124 = scmp.eq.s32.totalorder %s30, 0
    %p125 = por %p123, %p124
    %s127 = sadd.s32 %s126, 1
    %p130 = scmp.eq.s32.totalorder %s24, 1
    %p131 = scmp.ne.s32.totalorder %s126, %s128
    %p132 = scmp.eq.s32.totalorder %s24, 0
    %p133 = por %p131, %p132
    %p134 = scmp.ne.s32.totalorder %s126, %s128
    %p135 = scmp.eq.s32.totalorder %s29, 1
    %p136 = por %p134, %p135
    %p137 = scmp.ne.s32.totalorder %s128, %s129
    %p138 = scmp.eq.s32.totalorder %s29, 0
    %p139 = por %p137, %p138
    %p140 = scmp.ne.s32.totalorder %s128, %s129
    %p141 = scmp.eq.s32.totalorder %s30, 1
    %p142 = por %p140, %p141
    %p144 = scmp.ne.s32.totalorder %s129, %s143
    %p145 = scmp.eq.s32.totalorder %s30, 0
    %p146 = por %p144, %p145
    %s148 = sadd.s32 %s147, 1
    %p151 = scmp.eq.s32.totalorder %s24, 1
    %p152 = scmp.ne.s32.totalorder %s147, %s149
    %p153 = scmp.eq.s32.totalorder %s24, 0
    %p154 = por %p152, %p153
    %p155 = scmp.ne.s32.totalorder %s147, %s149
    %p156 = scmp.eq.s32.totalorder %s29, 1
    %p157 = por %p155, %p156
    %p158 = scmp.ne.s32.totalorder %s149, %s150
    %p159 = scmp.eq.s32.totalorder %s29, 0
    %p160 = por %p158, %p159
    %p161 = scmp.ne.s32.totalorder %s149, %s150
    %p162 = scmp.eq.s32.totalorder %s30, 1
    %p163 = por %p161, %p162
    %p165 = scmp.ne.s32.totalorder %s150, %s164
    %p166 = scmp.eq.s32.totalorder %s30, 0
    %p167 = por %p165, %p166
    %s169 = sadd.s32 %s168, 1
    %p172 = scmp.eq.s32.totalorder %s24, 1
    %p173 = scmp.ne.s32.totalorder %s168, %s170
    %p174 = scmp.eq.s32.totalorder %s24, 0
    %p175 = por %p173, %p174
    %p176 = scmp.ne.s32.totalorder %s168, %s170
    %p177 = scmp.eq.s32.totalorder %s29, 1
    %p178 = por %p176, %p177
    %p179 = scmp.ne.s32.totalorder %s170, %s171
    %p180 = scmp.eq.s32.totalorder %s29, 0
    %p181 = por %p179, %p180
    %p182 = scmp.ne.s32.totalorder %s170, %s171
    %p183 = scmp.eq.s32.totalorder %s30, 1
    %p184 = por %p182, %p183
    %p186 = scmp.ne.s32.totalorder %s171, %s185
    %p187 = scmp.eq.s32.totalorder %s30, 0
    %p188 = por %p186, %p187
    %s190 = sadd.s32 %s189, 1
    %p193 = scmp.eq.s32.totalorder %s24, 1
    %p194 = scmp.ne.s32.totalorder %s189, %s191
    %p195 = scmp.eq.s32.totalorder %s24, 0
    %p196 = por %p194, %p195
    %p197 = scmp.ne.s32.totalorder %s189, %s191
    %p198 = scmp.eq.s32.totalorder %s29, 1
    %p199 = por %p197, %p198
    %p200 = scmp.ne.s32.totalorder %s191, %s192
    %p201 = scmp.eq.s32.totalorder %s29, 0
    %p202 = por %p200, %p201
    %p203 = scmp.ne.s32.totalorder %s191, %s192
    %p204 = scmp.eq.s32.totalorder %s30, 1
    %p205 = por %p203, %p204
    %p207 = scmp.ne.s32.totalorder %s192, %s206
    %p208 = scmp.eq.s32.totalorder %s30, 0
    %p209 = por %p207, %p208
    %s211 = sadd.s32 %s210, 1
    %p214 = scmp.eq.s32.totalorder %s24, 1
    %p215 = scmp.ne.s32.totalorder %s210, %s212
    %p216 = scmp.eq.s32.totalorder %s24, 0
    %p217 = por %p215, %p216
    %p218 = scmp.ne.s32.totalorder %s210, %s212
    %p219 = scmp.eq.s32.totalorder %s29, 1
    %p220 = por %p218, %p219
    %p221 = scmp.ne.s32.totalorder %s212, %s213
    %p222 = scmp.eq.s32.totalorder %s29, 0
    %p223 = por %p221, %p222
    %p224 = scmp.ne.s32.totalorder %s212, %s213
    %p225 = scmp.eq.s32.totalorder %s30, 1
    %p226 = por %p224, %p225
    %p228 = scmp.ne.s32.totalorder %s213, %s227
    %p229 = scmp.eq.s32.totalorder %s30, 0
    %p230 = por %p228, %p229
    %s232 = sadd.s32 %s231, 1
    %p235 = scmp.eq.s32.totalorder %s24, 1
    %p236 = scmp.ne.s32.totalorder %s231, %s233
    %p237 = scmp.eq.s32.totalorder %s24, 0
    %p238 = por %p236, %p237
    %p239 = scmp.ne.s32.totalorder %s231, %s233
    %p240 = scmp.eq.s32.totalorder %s29, 1
    %p241 = por %p239, %p240
    %p242 = scmp.ne.s32.totalorder %s233, %s234
    %p243 = scmp.eq.s32.totalorder %s29, 0
    %p244 = por %p242, %p243
    %p245 = scmp.ne.s32.totalorder %s233, %s234
    %p246 = scmp.eq.s32.totalorder %s30, 1
    %p247 = por %p245, %p246
    %p249 = scmp.ne.s32.totalorder %s234, %s248
    %p250 = scmp.eq.s32.totalorder %s30, 0
    %p251 = por %p249, %p250
    %s253 = sadd.s32 %s252, 1
    %p256 = scmp.eq.s32.totalorder %s24, 1
    %p257 = scmp.ne.s32.totalorder %s252, %s254
    %p258 = scmp.eq.s32.totalorder %s24, 0
    %p259 = por %p257, %p258
    %p260 = scmp.ne.s32.totalorder %s252, %s254
    %p261 = scmp.eq.s32.totalorder %s29, 1
    %p262 = por %p260, %p261
    %p263 = scmp.ne.s32.totalorder %s254, %s255
    %p264 = scmp.eq.s32.totalorder %s29, 0
    %p265 = por %p263, %p264
    %p266 = scmp.ne.s32.totalorder %s254, %s255
    %p267 = scmp.eq.s32.totalorder %s30, 1
    %p268 = por %p266, %p267
    %p270 = scmp.ne.s32.totalorder %s255, %s269
    %p271 = scmp.eq.s32.totalorder %s30, 0
    %p272 = por %p270, %p271
    %s274 = sadd.s32 %s273, 1
    %p277 = scmp.eq.s32.totalorder %s24, 1
    %p278 = scmp.ne.s32.totalorder %s273, %s275
    %p279 = scmp.eq.s32.totalorder %s24, 0
    %p280 = por %p278, %p279
    %p281 = scmp.ne.s32.totalorder %s273, %s275
    %p282 = scmp.eq.s32.totalorder %s29, 1
    %p283 = por %p281, %p282
    %p284 = scmp.ne.s32.totalorder %s275, %s276
    %p285 = scmp.eq.s32.totalorder %s29, 0
    %p286 = por %p284, %p285
    %p287 = scmp.ne.s32.totalorder %s275, %s276
    %p288 = scmp.eq.s32.totalorder %s30, 1
    %p289 = por %p287, %p288
    %p291 = scmp.ne.s32.totalorder %s276, %s290
    %p292 = scmp.eq.s32.totalorder %s30, 0
    %p293 = por %p291, %p292
    %s295 = sadd.s32 %s294, 1
    %p298 = scmp.eq.s32.totalorder %s24, 1
    %p299 = scmp.ne.s32.totalorder %s294, %s296
    %p300 = scmp.eq.s32.totalorder %s24, 0
    %p301 = por %p299, %p300
    %p302 = scmp.ne.s32.totalorder %s294, %s296
    %p303 = scmp.eq.s32.totalorder %s29, 1
    %p304 = por %p302, %p303
    %p305 = scmp.ne.s32.totalorder %s296, %s297
    %p306 = scmp.eq.s32.totalorder %s29, 0
    %p307 = por %p305, %p306
    %p308 = scmp.ne.s32.totalorder %s296, %s297
    %p309 = scmp.eq.s32.totalorder %s30, 1
    %p310 = por %p308, %p309
    %p312 = scmp.ne.s32.totalorder %s297, %s311
    %p313 = scmp.eq.s32.totalorder %s30, 0
    %p314 = por %p312, %p313
    %s316 = sadd.s32 %s315, 1
    %p319 = scmp.eq.s32.totalorder %s24, 1
    %p320 = scmp.ne.s32.totalorder %s315, %s317
    %p321 = scmp.eq.s32.totalorder %s24, 0
    %p322 = por %p320, %p321
    %p323 = scmp.ne.s32.totalorder %s315, %s317
    %p324 = scmp.eq.s32.totalorder %s29, 1
    %p325 = por %p323, %p324
    %p326 = scmp.ne.s32.totalorder %s317, %s318
    %p327 = scmp.eq.s32.totalorder %s29, 0
    %p328 = por %p326, %p327
    %p329 = scmp.ne.s32.totalorder %s317, %s318
    %p330 = scmp.eq.s32.totalorder %s30, 1
    %p331 = por %p329, %p330
    %p333 = scmp.ne.s32.totalorder %s318, %s332
    %p334 = scmp.eq.s32.totalorder %s30, 0
    %p335 = por %p333, %p334
    %s337 = sadd.s32 %s336, 1
    %p340 = scmp.eq.s32.totalorder %s24, 1
    %p341 = scmp.ne.s32.totalorder %s336, %s338
    %p342 = scmp.eq.s32.totalorder %s24, 0
    %p343 = por %p341, %p342
    %p344 = scmp.ne.s32.totalorder %s336, %s338
    %p345 = scmp.eq.s32.totalorder %s29, 1
    %p346 = por %p344, %p345
    %p347 = scmp.ne.s32.totalorder %s338, %s339
    %p348 = scmp.eq.s32.totalorder %s29, 0
    %p349 = por %p347, %p348
    %p350 = scmp.ne.s32.totalorder %s338, %s339
    %p351 = scmp.eq.s32.totalorder %s30, 1
    %p352 = por %p350, %p351
    %p354 = scmp.ne.s32.totalorder %s339, %s353
    %p355 = scmp.eq.s32.totalorder %s30, 0
    %p356 = por %p354, %p355
    %s358 = sadd.s32 %s357, 1
    %p361 = scmp.eq.s32.totalorder %s24, 1
    %p362 = scmp.ne.s32.totalorder %s357, %s359
    %p363 = scmp.eq.s32.totalorder %s24, 0
    %p364 = por %p362, %p363
    %p365 = scmp.ne.s32.totalorder %s357, %s359
    %p366 = scmp.eq.s32.totalorder %s29, 1
    %p367 = por %p365, %p366
    %p368 = scmp.ne.s32.totalorder %s359, %s360
    %p369 = scmp.eq.s32.totalorder %s29, 0
    %p370 = por %p368, %p369
    %p371 = scmp.ne.s32.totalorder %s359, %s360
    %p372 = scmp.eq.s32.totalorder %s30, 1
    %p373 = por %p371, %p372
    %p375 = scmp.ne.s32.totalorder %s360, %s374
    %p376 = scmp.eq.s32.totalorder %s30, 0
    %p377 = por %p375, %p376
    %s379 = sadd.s32 %s378, 1
    %p382 = scmp.eq.s32.totalorder %s24, 1
    %p383 = scmp.ne.s32.totalorder %s378, %s380
    %p384 = scmp.eq.s32.totalorder %s24, 0
    %p385 = por %p383, %p384
    %p386 = scmp.ne.s32.totalorder %s378, %s380
    %p387 = scmp.eq.s32.totalorder %s29, 1
    %p388 = por %p386, %p387
    %p389 = scmp.ne.s32.totalorder %s380, %s381
    %p390 = scmp.eq.s32.totalorder %s29, 0
    %p391 = por %p389, %p390
    %p392 = scmp.ne.s32.totalorder %s380, %s381
    %p393 = scmp.eq.s32.totalorder %s30, 1
    %p394 = por %p392, %p393
    %p396 = scmp.ne.s32.totalorder %s381, %s395
    %p397 = scmp.eq.s32.totalorder %s30, 0
    %p398 = por %p396, %p397
    %s400 = sadd.s32 %s399, 1
    %p403 = scmp.eq.s32.totalorder %s24, 1
    %p404 = scmp.ne.s32.totalorder %s399, %s401
    %p405 = scmp.eq.s32.totalorder %s24, 0
    %p406 = por %p404, %p405
    %p407 = scmp.ne.s32.totalorder %s399, %s401
    %p408 = scmp.eq.s32.totalorder %s29, 1
    %p409 = por %p407, %p408
    %p410 = scmp.ne.s32.totalorder %s401, %s402
    %p411 = scmp.eq.s32.totalorder %s29, 0
    %p412 = por %p410, %p411
    %p413 = scmp.ne.s32.totalorder %s401, %s402
    %p414 = scmp.eq.s32.totalorder %s30, 1
    %p415 = por %p413, %p414
    %p417 = scmp.ne.s32.totalorder %s402, %s416
    %p418 = scmp.eq.s32.totalorder %s30, 0
    %p419 = por %p417, %p418
    %s420 = ssub.s32 %s24, %s31
    %p421 = scmp.eq.s32.totalorder %s420, 0
    %s423 = sadd.s32 %s422, 1
    %s424 = scalar_select %p421, %s422, %s423
    %p427 = pneg %p421
    %p428 = scmp.eq.s32.totalorder %s24, 1
    %p429 = por %p427, %p428
    %p430 = scmp.ne.s32.totalorder %s422, %s425
    %p431 = scmp.eq.s32.totalorder %s24, 0
    %p432 = por %p430, %p431
    %p433 = scmp.ne.s32.totalorder %s422, %s425
    %p434 = scmp.eq.s32.totalorder %s29, 1
    %p435 = por %p433, %p434
    %p436 = scmp.ne.s32.totalorder %s425, %s426
    %p437 = scmp.eq.s32.totalorder %s29, 0
    %p438 = por %p436, %p437
    %p439 = scmp.ne.s32.totalorder %s425, %s426
    %p440 = scmp.eq.s32.totalorder %s30, 1
    %p441 = por %p439, %p440
    %p443 = scmp.ne.s32.totalorder %s426, %s442
    %p444 = scmp.eq.s32.totalorder %s30, 0
    %p445 = por %p443, %p444
    %p446 = scmp.le.s32.totalorder 1, %s24
    %p447 = scmp.lt.s32.totalorder %s24, 3
    %p448 = pnand %p446, %p447
    %p449 = pneg %p448
    // Predicated region
    $region9: #{token_classification_forward.1} parent=5 // pred_check
      _
    $region10: #{token_classification_forward.1} parent=5 // pred_check_branch
      %451 = sbr.rel (%p448) target = $region12
    $region11: #{token_classification_forward.1} parent=5 // pred_region
      %s452 = ssub.s32 %s24, 1
      // Predicated region
      $region13: #{token_classification_forward.1} parent=11 // pred_check
        %p453 = pneg %p97
      $region14: #{token_classification_forward.1} parent=11 // pred_check_branch
        %455 = sbr.rel (%p453) target = $region16
      $region15: #{token_classification_forward.1} parent=11 // pred_region
        _
      $region16: #{token_classification_forward.1} parent=11 // pred_fallthru
        _
      // Predicated region
      $region17: #{token_classification_forward.1} parent=11 // pred_check
        %p456 = pneg %p118
      $region18: #{token_classification_forward.1} parent=11 // pred_check_branch
        %458 = sbr.rel (%p456) target = $region20
      $region19: #{token_classification_forward.1} parent=11 // pred_region
        _
      $region20: #{token_classification_forward.1} parent=11 // pred_fallthru
        _
      // Predicated region
      $region21: #{token_classification_forward.1} parent=11 // pred_check
        %p459 = pneg %p139
      $region22: #{token_classification_forward.1} parent=11 // pred_check_branch
        %461 = sbr.rel (%p459) target = $region24
      $region23: #{token_classification_forward.1} parent=11 // pred_region
        _
      $region24: #{token_classification_forward.1} parent=11 // pred_fallthru
        _
      // Predicated region
      $region25: #{token_classification_forward.1} parent=11 // pred_check
        %p462 = pneg %p160
      $region26: #{token_classification_forward.1} parent=11 // pred_check_branch
        %464 = sbr.rel (%p462) target = $region28
      $region27: #{token_classification_forward.1} parent=11 // pred_region
        _
      $region28: #{token_classification_forward.1} parent=11 // pred_fallthru
        _
      // Predicated region
      $region29: #{token_classification_forward.1} parent=11 // pred_check
        %p465 = pneg %p181
      $region30: #{token_classification_forward.1} parent=11 // pred_check_branch
        %467 = sbr.rel (%p465) target = $region32
      $region31: #{token_classification_forward.1} parent=11 // pred_region
        _
      $region32: #{token_classification_forward.1} parent=11 // pred_fallthru
        _
      // Predicated region
      $region33: #{token_classification_forward.1} parent=11 // pred_check
        %p468 = pneg %p202
      $region34: #{token_classification_forward.1} parent=11 // pred_check_branch
        %470 = sbr.rel (%p468) target = $region36
      $region35: #{token_classification_forward.1} parent=11 // pred_region
        _
      $region36: #{token_classification_forward.1} parent=11 // pred_fallthru
        _
      // Predicated region
      $region37: #{token_classification_forward.1} parent=11 // pred_check
        %p471 = pneg %p223
      $region38: #{token_classification_forward.1} parent=11 // pred_check_branch
        %473 = sbr.rel (%p471) target = $region40
      $region39: #{token_classification_forward.1} parent=11 // pred_region
        _
      $region40: #{token_classification_forward.1} parent=11 // pred_fallthru
        _
      // Predicated region
      $region41: #{token_classification_forward.1} parent=11 // pred_check
        %p474 = pneg %p244
      $region42: #{token_classification_forward.1} parent=11 // pred_check_branch
        %476 = sbr.rel (%p474) target = $region44
      $region43: #{token_classification_forward.1} parent=11 // pred_region
        _
      $region44: #{token_classification_forward.1} parent=11 // pred_fallthru
        _
      // Predicated region
      $region45: #{token_classification_forward.1} parent=11 // pred_check
        %p477 = pneg %p265
      $region46: #{token_classification_forward.1} parent=11 // pred_check_branch
        %479 = sbr.rel (%p477) target = $region48
      $region47: #{token_classification_forward.1} parent=11 // pred_region
        _
      $region48: #{token_classification_forward.1} parent=11 // pred_fallthru
        _
      // Predicated region
      $region49: #{token_classification_forward.1} parent=11 // pred_check
        %p480 = pneg %p286
      $region50: #{token_classification_forward.1} parent=11 // pred_check_branch
        %482 = sbr.rel (%p480) target = $region52
      $region51: #{token_classification_forward.1} parent=11 // pred_region
        _
      $region52: #{token_classification_forward.1} parent=11 // pred_fallthru
        _
      // Predicated region
      $region53: #{token_classification_forward.1} parent=11 // pred_check
        %p483 = pneg %p307
      $region54: #{token_classification_forward.1} parent=11 // pred_check_branch
        %485 = sbr.rel (%p483) target = $region56
      $region55: #{token_classification_forward.1} parent=11 // pred_region
        _
      $region56: #{token_classification_forward.1} parent=11 // pred_fallthru
        _
      // Predicated region
      $region57: #{token_classification_forward.1} parent=11 // pred_check
        %p486 = pneg %p328
      $region58: #{token_classification_forward.1} parent=11 // pred_check_branch
        %488 = sbr.rel (%p486) target = $region60
      $region59: #{token_classification_forward.1} parent=11 // pred_region
        _
      $region60: #{token_classification_forward.1} parent=11 // pred_fallthru
        _
      // Predicated region
      $region61: #{token_classification_forward.1} parent=11 // pred_check
        %p489 = pneg %p349
      $region62: #{token_classification_forward.1} parent=11 // pred_check_branch
        %491 = sbr.rel (%p489) target = $region64
      $region63: #{token_classification_forward.1} parent=11 // pred_region
        _
      $region64: #{token_classification_forward.1} parent=11 // pred_fallthru
        _
      // Predicated region
      $region65: #{token_classification_forward.1} parent=11 // pred_check
        %p492 = pneg %p370
      $region66: #{token_classification_forward.1} parent=11 // pred_check_branch
        %494 = sbr.rel (%p492) target = $region68
      $region67: #{token_classification_forward.1} parent=11 // pred_region
        _
      $region68: #{token_classification_forward.1} parent=11 // pred_fallthru
        _
      // Predicated region
      $region69: #{token_classification_forward.1} parent=11 // pred_check
        %p495 = pneg %p391
      $region70: #{token_classification_forward.1} parent=11 // pred_check_branch
        %497 = sbr.rel (%p495) target = $region72
      $region71: #{token_classification_forward.1} parent=11 // pred_region
        _
      $region72: #{token_classification_forward.1} parent=11 // pred_fallthru
        _
      // Predicated region
      $region73: #{token_classification_forward.1} parent=11 // pred_check
        %p498 = pneg %p412
      $region74: #{token_classification_forward.1} parent=11 // pred_check_branch
        %500 = sbr.rel (%p498) target = $region76
      $region75: #{token_classification_forward.1} parent=11 // pred_region
        _
      $region76: #{token_classification_forward.1} parent=11 // pred_fallthru
        _
    $region12: #{token_classification_forward.1} parent=5 // pred_fallthru
      _
    %p501 = scmp.lt.s32.totalorder %s24, 2
    // Predicated region
    $region77: #{token_classification_forward.1} parent=5 // pred_check
      %p502 = pneg %p501
    $region78: #{token_classification_forward.1} parent=5 // pred_check_branch
      %504 = sbr.rel (%p502) target = $region80
    $region79: #{token_classification_forward.1} parent=5 // pred_region
      // Predicated region
      $region81: #{token_classification_forward.1} parent=79 // pred_check
        %p505 = pneg %p44
      $region82: #{token_classification_forward.1} parent=79 // pred_check_branch
        %507 = sbr.rel (%p505) target = $region84
      $region83: #{token_classification_forward.1} parent=79 // pred_region
        %p508 = scmp.lt.s32.totalorder %s24, 1
        %s509 = scalar_select %p508, %s24, 1
        %s510 = smul.addr %s509, 8
        %s511 = scalar_lea.vmem %s0, %s510
      $region84: #{token_classification_forward.1} parent=79 // pred_fallthru
        _
      // Predicated region
      $region85: #{token_classification_forward.1} parent=79 // pred_check
        %p512 = pneg %p70
      $region86: #{token_classification_forward.1} parent=79 // pred_check_branch
        %514 = sbr.rel (%p512) target = $region88
      $region87: #{token_classification_forward.1} parent=79 // pred_region
        %p515 = scmp.lt.s32.totalorder %s24, 1
        %s516 = scalar_select %p515, %s24, 1
        %s517 = scalar_lea.vmem %s1, %s516
      $region88: #{token_classification_forward.1} parent=79 // pred_fallthru
        _
    $region80: #{token_classification_forward.1} parent=5 // pred_fallthru
      _
    %p518 = scmp.le.s32.totalorder 1, %s24
    %p519 = scmp.lt.s32.totalorder %s24, 3
    %p520 = pnand %p518, %p519
    %p521 = pneg %p520
    // Predicated region
    $region89: #{token_classification_forward.1} parent=5 // pred_check
      _
    $region90: #{token_classification_forward.1} parent=5 // pred_check_branch
      %523 = sbr.rel (%p520) target = $region92
    $region91: #{token_classification_forward.1} parent=5 // pred_region
      %s524 = ssub.s32 %s24, 1
      %p525 = scmp.lt.s32.totalorder %s29, 1
      %s526 = scalar_select %p525, %s29, 1
      %s527 = smul.addr %s526, 8
      %s528 = scalar_lea.vmem %s0, %s527
      %p529 = pneg %p50
      %p530 = pneg %p47
      %p531 = scmp.lt.s32.totalorder %s29, 1
      %s532 = scalar_select %p531, %s29, 1
      %s533 = scalar_lea.vmem %s1, %s532
      %p534 = pneg %p76
      %p535 = pneg %p73
      %p536 = pneg %p97
      %p537 = pneg %p94
      %p538 = pneg %p118
      %p539 = pneg %p115
      %p540 = pneg %p139
      %p541 = pneg %p136
      %p542 = pneg %p160
      %p543 = pneg %p157
      %p544 = pneg %p181
      %p545 = pneg %p178
      %p546 = pneg %p202
      %p547 = pneg %p199
      %p548 = pneg %p223
      %p549 = pneg %p220
      %p550 = pneg %p244
      %p551 = pneg %p241
      %p552 = pneg %p265
      %p553 = pneg %p262
      %p554 = pneg %p286
      %p555 = pneg %p283
      %p556 = pneg %p307
      %p557 = pneg %p304
      %p558 = pneg %p328
      %p559 = pneg %p325
      %p560 = pneg %p349
      %p561 = pneg %p346
      %p562 = pneg %p370
      %p563 = pneg %p367
      %p564 = pneg %p391
      %p565 = pneg %p388
      %p566 = pneg %p412
      %p567 = pneg %p409
      %p568 = pneg %p438
      %p569 = pneg %p435
      %p570 = scmp.lt.s32.totalorder %s29, 1
      %s571 = scalar_select %p570, %s29, 1
      %s572 = smul.addr %s571, 8
      %s573 = scalar_lea.vmem %s18, %s572
      %p574 = scmp.lt.s32.totalorder %s29, 1
      %s575 = scalar_select %p574, %s29, 1
      %s576 = smul.addr %s575, 8
      %s577 = scalar_lea.vmem %s0, %s576
      %p578 = scmp.lt.s32.totalorder %s29, 1
      %s579 = scalar_select %p578, %s29, 1
      %s580 = scalar_lea.vmem %s1, %s579
      %p581 = scmp.lt.s32.totalorder %s29, 1
      %s582 = scalar_select %p581, %s29, 1
      %s583 = smul.addr %s582, 8
      %s584 = scalar_lea.vmem %s18, %s583
      %v585 = vld [vmem:[%s577] sm:$0xff]
      %v586 = vld [vmem:[%s580] sm:$0x1]
      %v587 = vld [vmem:[%s2] sm:$0x1]
      %v588 = vld [vmem:[%s3] sm:$0x1]
      %vm589 = vcmask 261120
      %v590 = vsel %vm589, %v585, 0.0
      %591 = vadd.xlane.f32.xlu0 %v590
      %v592 = vpop.xlane.xlu0 %591
      %v593 = vrcp.pop 32.0
      %v594 = vmul.f32 %v592, %v593
      %v595 = vsub.f32 %v585, %v594
      %v596 = vmul.f32 %v595, %v595
      %v597 = vsel %vm589, %v596, 0.0
      %598 = vadd.xlane.f32.xlu0 %v597
      %v599 = vpop.xlane.xlu0 %598
      %v600 = vmul.f32 %v599, %v593
      %v601 = vadd.f32 %v600, 1e-05
      %v602 = vrsqrt.pop %v601
      %v603 = vmul.f32 %v595, %v602
      %v605 = vlaneseq
      %v606 = vshrl.u32 %v605, 7
      %v607 = vsub.s32 0, %v606
      %v608 = vrot.slane %v587, %v607
      %v610 = vmul.f32 %v603, %v608
      %v612 = vlaneseq
      %v613 = vshrl.u32 %v612, 7
      %v614 = vsub.s32 0, %v613
      %v615 = vrot.slane %v588, %v614
      %v617 = vadd.f32 %v610, %v615
      %v618 = vld [vmem:[%s4] sm:$0xff]
      %v619 = vld [vmem:[%s4 + $0x8] sm:$0xff]
      %v620 = vld [vmem:[%s4 + $0x10] sm:$0xff]
      %v621 = vld [vmem:[%s4 + $0x18] sm:$0xff]
      %v622 = vld [vmem:[%s5] sm:$0x1]
      %v624 = vlaneseq
      %v625 = vshrl.u32 %v624, 7
      %v626 = vsub.s32 0, %v625
      %v627 = vrot.slane %v622, %v626
      %v630 = vsel %vm589, %v617, 0
      %632 = vmatprep.subr.mxu0 0.0
      %633 = vmatpush1.msra.mxu0 0.0
      %634 = vmatprep.subr.mxu0 0.0
      %635 = vmatpush1.msra.mxu0 0.0
      %636 = vmatprep.subr.mxu0 0.0
      %637 = vmatpush1.msra.mxu0 0.0
      %638 = vmatprep.subr.mxu0 0.0
      %639 = vmatpush1.msra.mxu0 0.0
      %640 = vmatprep.subr.mxu0 0.0
      %641 = vmatpush1.msra.mxu0 0.0
      %642 = vmatprep.subr.mxu0 0.0
      %643 = vmatpush1.msra.mxu0 0.0
      %644 = vmatprep.subr.mxu0 0.0
      %645 = vmatpush1.msra.mxu0 0.0
      %646 = vmatprep.subr.mxu0 0.0
      %647 = vmatpush1.msra.mxu0 0.0
      %648 = vmatprep.subr.mxu0 0.0
      %649 = vmatpush1.msra.mxu0 0.0
      %650 = vmatprep.subr.mxu0 0.0
      %651 = vmatpush1.msra.mxu0 0.0
      %652 = vmatprep.subr.mxu0 0.0
      %653 = vmatpush1.msra.mxu0 0.0
      %654 = vmatprep.subr.mxu0 0.0
      %655 = vmatpush1.msra.mxu0 0.0
      %656 = vmatprep.subr.mxu0 0.0
      %657 = vmatpush1.msra.mxu0 %v621
      %658 = vmatprep.subr.mxu0 0.0
      %659 = vmatpush1.msra.mxu0 %v620
      %660 = vmatprep.subr.mxu0 0.0
      %661 = vmatpush1.msra.mxu0 %v619
      %662 = vmatprep.subr.mxu0 0.0
      %663 = vmatpush1.msra.mxu0 %v618
      %664 = vmatprep.subr.mxu0 0.0
      %665 = vmatpush2.msra.mxu0 0.0
      %666 = vmatprep.subr.mxu0 0.0
      %667 = vmatpush2.msra.mxu0 0.0
      %668 = vmatprep.subr.mxu0 0.0
      %669 = vmatpush2.msra.mxu0 0.0
      %670 = vmatprep.subr.mxu0 0.0
      %671 = vmatpush2.msra.mxu0 0.0
      %672 = vmatprep.subr.mxu0 0.0
      %673 = vmatpush2.msra.mxu0 0.0
      %674 = vmatprep.subr.mxu0 0.0
      %675 = vmatpush2.msra.mxu0 0.0
      %676 = vmatprep.subr.mxu0 0.0
      %677 = vmatpush2.msra.mxu0 0.0
      %678 = vmatprep.subr.mxu0 0.0
      %679 = vmatpush2.msra.mxu0 0.0
      %680 = vmatprep.subr.mxu0 0.0
      %681 = vmatpush2.msra.mxu0 0.0
      %682 = vmatprep.subr.mxu0 0.0
      %683 = vmatpush2.msra.mxu0 0.0
      %684 = vmatprep.subr.mxu0 0.0
      %685 = vmatpush2.msra.mxu0 0.0
      %686 = vmatprep.subr.mxu0 0.0
      %687 = vmatpush2.msra.mxu0 0.0
      %688 = vmatprep.subr.mxu0 0.0
      %689 = vmatpush2.msra.mxu0 0.0
      %690 = vmatprep.subr.mxu0 0.0
      %691 = vmatpush2.msra.mxu0 0.0
      %692 = vmatprep.subr.mxu0 0.0
      %693 = vmatpush2.msra.mxu0 0.0
      %694 = vmatprep.subr.mxu0 0.0
      %695 = vmatpush2.msra.mxu0 0.0
      %696 = vmatprep.mubr.f32.mxu0 0.0
      %697 = vmatmul.mubr.f32.gmra.mxu0 %v630
      %v698 = vpop.f32.mrf.mxu0
      %v699 = vadd.f32 %v627, %v698
      %v700 = vpop.f32.mrf.mxu0
      %701 = vdwg.mxu0
      %703 = vrot.lane.b32.xlu0 %v699, 96
      %v704 = vpop.permute.xlu0 %703
      %vm705 = vcmask 130048
      %v706 = vsel %vm705, %v699, 0
      %v708 = vsel %vm705, %v704, 0
      %710 = vmatprep.subr.mxu0 0.0
      %711 = vmatpush1.xpose.msra.mxu0 0.0
      %712 = vmatprep.subr.mxu0 0.0
      %713 = vmatpush1.xpose.msra.mxu0 0.0
      %714 = vmatprep.subr.mxu0 0.0
      %715 = vmatpush1.xpose.msra.mxu0 0.0
      %716 = vmatprep.subr.mxu0 0.0
      %717 = vmatpush1.xpose.msra.mxu0 0.0
      %718 = vmatprep.subr.mxu0 0.0
      %719 = vmatpush1.xpose.msra.mxu0 0.0
      %720 = vmatprep.subr.mxu0 0.0
      %721 = vmatpush1.xpose.msra.mxu0 0.0
      %722 = vmatprep.subr.mxu0 0.0
      %723 = vmatpush1.xpose.msra.mxu0 0.0
      %724 = vmatprep.subr.mxu0 0.0
      %725 = vmatpush1.xpose.msra.mxu0 0.0
      %726 = vmatprep.subr.mxu0 0.0
      %727 = vmatpush1.xpose.msra.mxu0 0.0
      %728 = vmatprep.subr.mxu0 0.0
      %729 = vmatpush1.xpose.msra.mxu0 0.0
      %730 = vmatprep.subr.mxu0 0.0
      %731 = vmatpush1.xpose.msra.mxu0 0.0
      %732 = vmatprep.subr.mxu0 0.0
      %733 = vmatpush1.xpose.msra.mxu0 0.0
      %734 = vmatprep.subr.mxu0 0.0
      %735 = vmatpush1.xpose.msra.mxu0 0.0
      %736 = vmatprep.subr.mxu0 0.0
      %737 = vmatpush1.xpose.msra.mxu0 0.0
      %738 = vmatprep.subr.mxu0 0.0
      %739 = vmatpush1.xpose.msra.mxu0 0.0
      %740 = vmatprep.subr.mxu0 0.0
      %741 = vmatpush1.xpose.msra.mxu0 %v708
      %742 = vmatprep.subr.mxu0 0.0
      %743 = vmatpush2.xpose.msra.mxu0 0.0
      %744 = vmatprep.subr.mxu0 0.0
      %745 = vmatpush2.xpose.msra.mxu0 0.0
      %746 = vmatprep.subr.mxu0 0.0
      %747 = vmatpush2.xpose.msra.mxu0 0.0
      %748 = vmatprep.subr.mxu0 0.0
      %749 = vmatpush2.xpose.msra.mxu0 0.0
      %750 = vmatprep.subr.mxu0 0.0
      %751 = vmatpush2.xpose.msra.mxu0 0.0
      %752 = vmatprep.subr.mxu0 0.0
      %753 = vmatpush2.xpose.msra.mxu0 0.0
      %754 = vmatprep.subr.mxu0 0.0
      %755 = vmatpush2.xpose.msra.mxu0 0.0
      %756 = vmatprep.subr.mxu0 0.0
      %757 = vmatpush2.xpose.msra.mxu0 0.0
      %758 = vmatprep.subr.mxu0 0.0
      %759 = vmatpush2.xpose.msra.mxu0 0.0
      %760 = vmatprep.subr.mxu0 0.0
      %761 = vmatpush2.xpose.msra.mxu0 0.0
      %762 = vmatprep.subr.mxu0 0.0
      %763 = vmatpush2.xpose.msra.mxu0 0.0
      %764 = vmatprep.subr.mxu0 0.0
      %765 = vmatpush2.xpose.msra.mxu0 0.0
      %766 = vmatprep.subr.mxu0 0.0
      %767 = vmatpush2.xpose.msra.mxu0 0.0
      %768 = vmatprep.subr.mxu0 0.0
      %769 = vmatpush2.xpose.msra.mxu0 0.0
      %770 = vmatprep.subr.mxu0 0.0
      %771 = vmatpush2.xpose.msra.mxu0 0.0
      %772 = vmatprep.subr.mxu0 0.0
      %773 = vmatpush2.xpose.msra.mxu0 0.0
      %774 = vmatprep.mubr.f32.mxu0 0.0
      %775 = vmatmul.mubr.f32.gmra.mxu0 %v706
      %v776 = vpop.f32.mrf.mxu0
      %v777 = vadd.f32 0.0, %v776
      %v778 = vpop.f32.mrf.mxu0
      %779 = vdwg.mxu0
      %v780 = vmul.f32 %v777, 0.25
      %v782 = vlaneseq
      %v783 = vshrl.u32 %v782, 7
      %v784 = vsub.s32 0, %v783
      %v785 = vrot.slane %v586, %v784
      %v787 = vadd.f32 %v780, %v785
      %vm788 = vcmask 64512
      %v789 = vsel %vm788, %v787, -inf
      %790 = vmax.xlane.f32.xlu0 %v789
      %v791 = vpop.xlane.xlu0 %790
      %v792 = vsub.f32 %v787, %v791
      %v793 = vmul.f32 %v792, 1.442695
      %v794 = vpow.pop %v793
      %v795 = vsel %vm788, %v794, 0.0
      %796 = vadd.xlane.f32.xlu0 %v795
      %v797 = vpop.xlane.xlu0 %796
      %v798 = vrcp.pop %v797
      %v799 = vmul.f32 %v794, %v798
      %800 = vrot.lane.b32.xlu0 %v699, 64
      %v801 = vpop.permute.xlu0 %800
      %v804 = vsel %vm788, %v799, 0
      %806 = vmatprep.subr.mxu0 0.0
      %807 = vmatpush1.msra.mxu0 0.0
      %808 = vmatprep.subr.mxu0 0.0
      %809 = vmatpush1.msra.mxu0 0.0
      %810 = vmatprep.subr.mxu0 0.0
      %811 = vmatpush1.msra.mxu0 0.0
      %812 = vmatprep.subr.mxu0 0.0
      %813 = vmatpush1.msra.mxu0 0.0
      %814 = vmatprep.subr.mxu0 0.0
      %815 = vmatpush1.msra.mxu0 0.0
      %816 = vmatprep.subr.mxu0 0.0
      %817 = vmatpush1.msra.mxu0 0.0
      %818 = vmatprep.subr.mxu0 0.0
      %819 = vmatpush1.msra.mxu0 0.0
      %820 = vmatprep.subr.mxu0 0.0
      %821 = vmatpush1.msra.mxu0 0.0
      %822 = vmatprep.subr.mxu0 0.0
      %823 = vmatpush1.msra.mxu0 0.0
      %824 = vmatprep.subr.mxu0 0.0
      %825 = vmatpush1.msra.mxu0 0.0
      %826 = vmatprep.subr.mxu0 0.0
      %827 = vmatpush1.msra.mxu0 0.0
      %828 = vmatprep.subr.mxu0 0.0
      %829 = vmatpush1.msra.mxu0 0.0
      %830 = vmatprep.subr.mxu0 0.0
      %831 = vmatpush1.msra.mxu0 0.0
      %832 = vmatprep.subr.mxu0 0.0
      %833 = vmatpush1.msra.mxu0 0.0
      %834 = vmatprep.subr.mxu0 0.0
      %835 = vmatpush1.msra.mxu0 0.0
      %836 = vmatprep.subr.mxu0 0.0
      %837 = vmatpush1.msra.mxu0 %v801
      %838 = vmatprep.subr.mxu0 0.0
      %839 = vmatpush2.msra.mxu0 0.0
      %840 = vmatprep.subr.mxu0 0.0
      %841 = vmatpush2.msra.mxu0 0.0
      %842 = vmatprep.subr.mxu0 0.0
      %843 = vmatpush2.msra.mxu0 0.0
      %844 = vmatprep.subr.mxu0 0.0
      %845 = vmatpush2.msra.mxu0 0.0
      %846 = vmatprep.subr.mxu0 0.0
      %847 = vmatpush2.msra.mxu0 0.0
      %848 = vmatprep.subr.mxu0 0.0
      %849 = vmatpush2.msra.mxu0 0.0
      %850 = vmatprep.subr.mxu0 0.0
      %851 = vmatpush2.msra.mxu0 0.0
      %852 = vmatprep.subr.mxu0 0.0
      %853 = vmatpush2.msra.mxu0 0.0
      %854 = vmatprep.subr.mxu0 0.0
      %855 = vmatpush2.msra.mxu0 0.0
      %856 = vmatprep.subr.mxu0 0.0
      %857 = vmatpush2.msra.mxu0 0.0
      %858 = vmatprep.subr.mxu0 0.0
      %859 = vmatpush2.msra.mxu0 0.0
      %860 = vmatprep.subr.mxu0 0.0
      %861 = vmatpush2.msra.mxu0 0.0
      %862 = vmatprep.subr.mxu0 0.0
      %863 = vmatpush2.msra.mxu0 0.0
      %864 = vmatprep.subr.mxu0 0.0
      %865 = vmatpush2.msra.mxu0 0.0
      %866 = vmatprep.subr.mxu0 0.0
      %867 = vmatpush2.msra.mxu0 0.0
      %868 = vmatprep.subr.mxu0 0.0
      %869 = vmatpush2.msra.mxu0 0.0
      %870 = vmatprep.mubr.f32.mxu0 0.0
      %871 = vmatmul.mubr.f32.gmra.mxu0 %v804
      %v872 = vpop.f32.mrf.mxu0
      %v873 = vadd.f32 0.0, %v872
      %v874 = vpop.f32.mrf.mxu0
      %875 = vdwg.mxu0
      %876 = vrot.lane.b32.xlu0 %v699, 112
      %v877 = vpop.permute.xlu0 %876
      %878 = vrot.lane.b32.xlu0 %v699, 80
      %v879 = vpop.permute.xlu0 %878
      %v880 = vsel %vm705, %v877, 0
      %v882 = vsel %vm705, %v879, 0
      %884 = vmatprep.subr.mxu0 0.0
      %885 = vmatpush1.xpose.msra.mxu0 0.0
      %886 = vmatprep.subr.mxu0 0.0
      %887 = vmatpush1.xpose.msra.mxu0 0.0
      %888 = vmatprep.subr.mxu0 0.0
      %889 = vmatpush1.xpose.msra.mxu0 0.0
      %890 = vmatprep.subr.mxu0 0.0
      %891 = vmatpush1.xpose.msra.mxu0 0.0
      %892 = vmatprep.subr.mxu0 0.0
      %893 = vmatpush1.xpose.msra.mxu0 0.0
      %894 = vmatprep.subr.mxu0 0.0
      %895 = vmatpush1.xpose.msra.mxu0 0.0
      %896 = vmatprep.subr.mxu0 0.0
      %897 = vmatpush1.xpose.msra.mxu0 0.0
      %898 = vmatprep.subr.mxu0 0.0
      %899 = vmatpush1.xpose.msra.mxu0 0.0
      %900 = vmatprep.subr.mxu0 0.0
      %901 = vmatpush1.xpose.msra.mxu0 0.0
      %902 = vmatprep.subr.mxu0 0.0
      %903 = vmatpush1.xpose.msra.mxu0 0.0
      %904 = vmatprep.subr.mxu0 0.0
      %905 = vmatpush1.xpose.msra.mxu0 0.0
      %906 = vmatprep.subr.mxu0 0.0
      %907 = vmatpush1.xpose.msra.mxu0 0.0
      %908 = vmatprep.subr.mxu0 0.0
      %909 = vmatpush1.xpose.msra.mxu0 0.0
      %910 = vmatprep.subr.mxu0 0.0
      %911 = vmatpush1.xpose.msra.mxu0 0.0
      %912 = vmatprep.subr.mxu0 0.0
      %913 = vmatpush1.xpose.msra.mxu0 0.0
      %914 = vmatprep.subr.mxu0 0.0
      %915 = vmatpush1.xpose.msra.mxu0 %v882
      %916 = vmatprep.subr.mxu0 0.0
      %917 = vmatpush2.xpose.msra.mxu0 0.0
      %918 = vmatprep.subr.mxu0 0.0
      %919 = vmatpush2.xpose.msra.mxu0 0.0
      %920 = vmatprep.subr.mxu0 0.0
      %921 = vmatpush2.xpose.msra.mxu0 0.0
      %922 = vmatprep.subr.mxu0 0.0
      %923 = vmatpush2.xpose.msra.mxu0 0.0
      %924 = vmatprep.subr.mxu0 0.0
      %925 = vmatpush2.xpose.msra.mxu0 0.0
      %926 = vmatprep.subr.mxu0 0.0
      %927 = vmatpush2.xpose.msra.mxu0 0.0
      %928 = vmatprep.subr.mxu0 0.0
      %929 = vmatpush2.xpose.msra.mxu0 0.0
      %930 = vmatprep.subr.mxu0 0.0
      %931 = vmatpush2.xpose.msra.mxu0 0.0
      %932 = vmatprep.subr.mxu0 0.0
      %933 = vmatpush2.xpose.msra.mxu0 0.0
      %934 = vmatprep.subr.mxu0 0.0
      %935 = vmatpush2.xpose.msra.mxu0 0.0
      %936 = vmatprep.subr.mxu0 0.0
      %937 = vmatpush2.xpose.msra.mxu0 0.0
      %938 = vmatprep.subr.mxu0 0.0
      %939 = vmatpush2.xpose.msra.mxu0 0.0
      %940 = vmatprep.subr.mxu0 0.0
      %941 = vmatpush2.xpose.msra.mxu0 0.0
      %942 = vmatprep.subr.mxu0 0.0
      %943 = vmatpush2.xpose.msra.mxu0 0.0
      %944 = vmatprep.subr.mxu0 0.0
      %945 = vmatpush2.xpose.msra.mxu0 0.0
      %946 = vmatprep.subr.mxu0 0.0
      %947 = vmatpush2.xpose.msra.mxu0 0.0
      %948 = vmatprep.mubr.f32.mxu0 0.0
      %949 = vmatmul.mubr.f32.gmra.mxu0 %v880
      %v950 = vpop.f32.mrf.mxu0
      %v951 = vadd.f32 0.0, %v950
      %v952 = vpop.f32.mrf.mxu0
      %953 = vdwg.mxu0
      %v954 = vmul.f32 %v951, 0.25
      %v955 = vadd.f32 %v954, %v785
      %v956 = vsel %vm788, %v955, -inf
      %957 = vmax.xlane.f32.xlu0 %v956
      %v958 = vpop.xlane.xlu0 %957
      %v959 = vsub.f32 %v955, %v958
      %v960 = vmul.f32 %v959, 1.442695
      %v961 = vpow.pop %v960
      %v962 = vsel %vm788, %v961, 0.0
      %963 = vadd.xlane.f32.xlu0 %v962
      %v964 = vpop.xlane.xlu0 %963
      %v965 = vrcp.pop %v964
      %v966 = vmul.f32 %v961, %v965
      %967 = vrot.lane.b32.xlu0 %v699, 48
      %v968 = vpop.permute.xlu0 %967
      %v971 = vsel %vm788, %v966, 0
      %973 = vmatprep.subr.mxu0 0.0
      %974 = vmatpush1.msra.mxu0 0.0
      %975 = vmatprep.subr.mxu0 0.0
      %976 = vmatpush1.msra.mxu0 0.0
      %977 = vmatprep.subr.mxu0 0.0
      %978 = vmatpush1.msra.mxu0 0.0
      %979 = vmatprep.subr.mxu0 0.0
      %980 = vmatpush1.msra.mxu0 0.0
      %981 = vmatprep.subr.mxu0 0.0
      %982 = vmatpush1.msra.mxu0 0.0
      %983 = vmatprep.subr.mxu0 0.0
      %984 = vmatpush1.msra.mxu0 0.0
      %985 = vmatprep.subr.mxu0 0.0
      %986 = vmatpush1.msra.mxu0 0.0
      %987 = vmatprep.subr.mxu0 0.0
      %988 = vmatpush1.msra.mxu0 0.0
      %989 = vmatprep.subr.mxu0 0.0
      %990 = vmatpush1.msra.mxu0 0.0
      %991 = vmatprep.subr.mxu0 0.0
      %992 = vmatpush1.msra.mxu0 0.0
      %993 = vmatprep.subr.mxu0 0.0
      %994 = vmatpush1.msra.mxu0 0.0
      %995 = vmatprep.subr.mxu0 0.0
      %996 = vmatpush1.msra.mxu0 0.0
      %997 = vmatprep.subr.mxu0 0.0
      %998 = vmatpush1.msra.mxu0 0.0
      %999 = vmatprep.subr.mxu0 0.0
      %1000 = vmatpush1.msra.mxu0 0.0
      %1001 = vmatprep.subr.mxu0 0.0
      %1002 = vmatpush1.msra.mxu0 0.0
      %1003 = vmatprep.subr.mxu0 0.0
      %1004 = vmatpush1.msra.mxu0 %v968
      %1005 = vmatprep.subr.mxu0 0.0
      %1006 = vmatpush2.msra.mxu0 0.0
      %1007 = vmatprep.subr.mxu0 0.0
      %1008 = vmatpush2.msra.mxu0 0.0
      %1009 = vmatprep.subr.mxu0 0.0
      %1010 = vmatpush2.msra.mxu0 0.0
      %1011 = vmatprep.subr.mxu0 0.0
      %1012 = vmatpush2.msra.mxu0 0.0
      %1013 = vmatprep.subr.mxu0 0.0
      %1014 = vmatpush2.msra.mxu0 0.0
      %1015 = vmatprep.subr.mxu0 0.0
      %1016 = vmatpush2.msra.mxu0 0.0
      %1017 = vmatprep.subr.mxu0 0.0
      %1018 = vmatpush2.msra.mxu0 0.0
      %1019 = vmatprep.subr.mxu0 0.0
      %1020 = vmatpush2.msra.mxu0 0.0
      %1021 = vmatprep.subr.mxu0 0.0
      %1022 = vmatpush2.msra.mxu0 0.0
      %1023 = vmatprep.subr.mxu0 0.0
      %1024 = vmatpush2.msra.mxu0 0.0
      %1025 = vmatprep.subr.mxu0 0.0
      %1026 = vmatpush2.msra.mxu0 0.0
      %1027 = vmatprep.subr.mxu0 0.0
      %1028 = vmatpush2.msra.mxu0 0.0
      %1029 = vmatprep.subr.mxu0 0.0
      %1030 = vmatpush2.msra.mxu0 0.0
      %1031 = vmatprep.subr.mxu0 0.0
      %1032 = vmatpush2.msra.mxu0 0.0
      %1033 = vmatprep.subr.mxu0 0.0
      %1034 = vmatpush2.msra.mxu0 0.0
      %1035 = vmatprep.subr.mxu0 0.0
      %1036 = vmatpush2.msra.mxu0 0.0
      %1037 = vmatprep.mubr.f32.mxu0 0.0
      %1038 = vmatmul.mubr.f32.gmra.mxu0 %v971
      %v1039 = vpop.f32.mrf.mxu0
      %v1040 = vadd.f32 0.0, %v1039
      %v1041 = vpop.f32.mrf.mxu0
      %1042 = vdwg.mxu0
      %1044 = vrot.lane.b32.xlu0 %v1040, 16
      %v1045 = vpop.permute.xlu0 %1044
      %v1047 = vsel %vm705, %v873, %v1045
      %v1048 = vld [vmem:[%s6] sm:$0xff]
      %v1049 = vld [vmem:[%s6 + $0x8] sm:$0xff]
      %v1050 = vld [vmem:[%s6 + $0x10] sm:$0xff]
      %v1051 = vld [vmem:[%s6 + $0x18] sm:$0xff]
      %v1052 = vld [vmem:[%s7] sm:$0x1]
      %v1054 = vlaneseq
      %v1055 = vshrl.u32 %v1054, 7
      %v1056 = vsub.s32 0, %v1055
      %v1057 = vrot.slane %v1052, %v1056
      %v1060 = vsel %vm589, %v1047, 0
      %1062 = vmatprep.subr.mxu0 0.0
      %1063 = vmatpush1.msra.mxu0 0.0
      %1064 = vmatprep.subr.mxu0 0.0
      %1065 = vmatpush1.msra.mxu0 0.0
      %1066 = vmatprep.subr.mxu0 0.0
      %1067 = vmatpush1.msra.mxu0 0.0
      %1068 = vmatprep.subr.mxu0 0.0
      %1069 = vmatpush1.msra.mxu0 0.0
      %1070 = vmatprep.subr.mxu0 0.0
      %1071 = vmatpush1.msra.mxu0 0.0
      %1072 = vmatprep.subr.mxu0 0.0
      %1073 = vmatpush1.msra.mxu0 0.0
      %1074 = vmatprep.subr.mxu0 0.0
      %1075 = vmatpush1.msra.mxu0 0.0
      %1076 = vmatprep.subr.mxu0 0.0
      %1077 = vmatpush1.msra.mxu0 0.0
      %1078 = vmatprep.subr.mxu0 0.0
      %1079 = vmatpush1.msra.mxu0 0.0
      %1080 = vmatprep.subr.mxu0 0.0
      %1081 = vmatpush1.msra.mxu0 0.0
      %1082 = vmatprep.subr.mxu0 0.0
      %1083 = vmatpush1.msra.mxu0 0.0
      %1084 = vmatprep.subr.mxu0 0.0
      %1085 = vmatpush1.msra.mxu0 0.0
      %1086 = vmatprep.subr.mxu0 0.0
      %1087 = vmatpush1.msra.mxu0 %v1051
      %1088 = vmatprep.subr.mxu0 0.0
      %1089 = vmatpush1.msra.mxu0 %v1050
      %1090 = vmatprep.subr.mxu0 0.0
      %1091 = vmatpush1.msra.mxu0 %v1049
      %1092 = vmatprep.subr.mxu0 0.0
      %1093 = vmatpush1.msra.mxu0 %v1048
      %1094 = vmatprep.subr.mxu0 0.0
      %1095 = vmatpush2.msra.mxu0 0.0
      %1096 = vmatprep.subr.mxu0 0.0
      %1097 = vmatpush2.msra.mxu0 0.0
      %1098 = vmatprep.subr.mxu0 0.0
      %1099 = vmatpush2.msra.mxu0 0.0
      %1100 = vmatprep.subr.mxu0 0.0
      %1101 = vmatpush2.msra.mxu0 0.0
      %1102 = vmatprep.subr.mxu0 0.0
      %1103 = vmatpush2.msra.mxu0 0.0
      %1104 = vmatprep.subr.mxu0 0.0
      %1105 = vmatpush2.msra.mxu0 0.0
      %1106 = vmatprep.subr.mxu0 0.0
      %1107 = vmatpush2.msra.mxu0 0.0
      %1108 = vmatprep.subr.mxu0 0.0
      %1109 = vmatpush2.msra.mxu0 0.0
      %1110 = vmatprep.subr.mxu0 0.0
      %1111 = vmatpush2.msra.mxu0 0.0
      %1112 = vmatprep.subr.mxu0 0.0
      %1113 = vmatpush2.msra.mxu0 0.0
      %1114 = vmatprep.subr.mxu0 0.0
      %1115 = vmatpush2.msra.mxu0 0.0
      %1116 = vmatprep.subr.mxu0 0.0
      %1117 = vmatpush2.msra.mxu0 0.0
      %1118 = vmatprep.subr.mxu0 0.0
      %1119 = vmatpush2.msra.mxu0 0.0
      %1120 = vmatprep.subr.mxu0 0.0
      %1121 = vmatpush2.msra.mxu0 0.0
      %1122 = vmatprep.subr.mxu0 0.0
      %1123 = vmatpush2.msra.mxu0 0.0
      %1124 = vmatprep.subr.mxu0 0.0
      %1125 = vmatpush2.msra.mxu0 0.0
      %1126 = vmatprep.mubr.f32.mxu0 0.0
      %1127 = vmatmul.mubr.f32.gmra.mxu0 %v1060
      %v1128 = vpop.f32.mrf.mxu0
      %v1129 = vadd.f32 %v1057, %v1128
      %v1130 = vpop.f32.mrf.mxu0
      %1131 = vdwg.mxu0
      %v1132 = vadd.f32 %v617, %v1129
      %v1133 = vld [vmem:[%s8] sm:$0x1]
      %v1134 = vld [vmem:[%s9] sm:$0x1]
      %v1135 = vsel %vm589, %v1132, 0.0
      %1136 = vadd.xlane.f32.xlu0 %v1135
      %v1137 = vpop.xlane.xlu0 %1136
      %v1138 = vmul.f32 %v1137, %v593
      %v1139 = vsub.f32 %v1132, %v1138
      %v1140 = vmul.f32 %v1139, %v1139
      %v1141 = vsel %vm589, %v1140, 0.0
      %1142 = vadd.xlane.f32.xlu0 %v1141
      %v1143 = vpop.xlane.xlu0 %1142
      %v1144 = vmul.f32 %v1143, %v593
      %v1145 = vadd.f32 %v1144, 1e-05
      %v1146 = vrsqrt.pop %v1145
      %v1147 = vmul.f32 %v1139, %v1146
      %v1149 = vlaneseq
      %v1150 = vshrl.u32 %v1149, 7
      %v1151 = vsub.s32 0, %v1150
      %v1152 = vrot.slane %v1133, %v1151
      %v1154 = vmul.f32 %v1147, %v1152
      %v1156 = vlaneseq
      %v1157 = vshrl.u32 %v1156, 7
      %v1158 = vsub.s32 0, %v1157
      %v1159 = vrot.slane %v1134, %v1158
      %v1161 = vadd.f32 %v1154, %v1159
      %v1162 = vld [vmem:[%s10] sm:$0xff]
      %v1163 = vld [vmem:[%s10 + $0x8] sm:$0xff]
      %v1164 = vld [vmem:[%s10 + $0x10] sm:$0xff]
      %v1165 = vld [vmem:[%s10 + $0x18] sm:$0xff]
      %v1166 = vld [vmem:[%s11] sm:$0x1]
      %v1168 = vlaneseq
      %v1169 = vshrl.u32 %v1168, 7
      %v1170 = vsub.s32 0, %v1169
      %v1171 = vrot.slane %v1166, %v1170
      %v1174 = vsel %vm589, %v1161, 0
      %1176 = vmatprep.subr.mxu0 0.0
      %1177 = vmatpush1.msra.mxu0 0.0
      %1178 = vmatprep.subr.mxu0 0.0
      %1179 = vmatpush1.msra.mxu0 0.0
      %1180 = vmatprep.subr.mxu0 0.0
      %1181 = vmatpush1.msra.mxu0 0.0
      %1182 = vmatprep.subr.mxu0 0.0
      %1183 = vmatpush1.msra.mxu0 0.0
      %1184 = vmatprep.subr.mxu0 0.0
      %1185 = vmatpush1.msra.mxu0 0.0
      %1186 = vmatprep.subr.mxu0 0.0
      %1187 = vmatpush1.msra.mxu0 0.0
      %1188 = vmatprep.subr.mxu0 0.0
      %1189 = vmatpush1.msra.mxu0 0.0
      %1190 = vmatprep.subr.mxu0 0.0
      %1191 = vmatpush1.msra.mxu0 0.0
      %1192 = vmatprep.subr.mxu0 0.0
      %1193 = vmatpush1.msra.mxu0 0.0
      %1194 = vmatprep.subr.mxu0 0.0
      %1195 = vmatpush1.msra.mxu0 0.0
      %1196 = vmatprep.subr.mxu0 0.0
      %1197 = vmatpush1.msra.mxu0 0.0
      %1198 = vmatprep.subr.mxu0 0.0
      %1199 = vmatpush1.msra.mxu0 0.0
      %1200 = vmatprep.subr.mxu0 0.0
      %1201 = vmatpush1.msra.mxu0 %v1165
      %1202 = vmatprep.subr.mxu0 0.0
      %1203 = vmatpush1.msra.mxu0 %v1164
      %1204 = vmatprep.subr.mxu0 0.0
      %1205 = vmatpush1.msra.mxu0 %v1163
      %1206 = vmatprep.subr.mxu0 0.0
      %1207 = vmatpush1.msra.mxu0 %v1162
      %1208 = vmatprep.subr.mxu0 0.0
      %1209 = vmatpush2.msra.mxu0 0.0
      %1210 = vmatprep.subr.mxu0 0.0
      %1211 = vmatpush2.msra.mxu0 0.0
      %1212 = vmatprep.subr.mxu0 0.0
      %1213 = vmatpush2.msra.mxu0 0.0
      %1214 = vmatprep.subr.mxu0 0.0
      %1215 = vmatpush2.msra.mxu0 0.0
      %1216 = vmatprep.subr.mxu0 0.0
      %1217 = vmatpush2.msra.mxu0 0.0
      %1218 = vmatprep.subr.mxu0 0.0
      %1219 = vmatpush2.msra.mxu0 0.0
      %1220 = vmatprep.subr.mxu0 0.0
      %1221 = vmatpush2.msra.mxu0 0.0
      %1222 = vmatprep.subr.mxu0 0.0
      %1223 = vmatpush2.msra.mxu0 0.0
      %1224 = vmatprep.subr.mxu0 0.0
      %1225 = vmatpush2.msra.mxu0 0.0
      %1226 = vmatprep.subr.mxu0 0.0
      %1227 = vmatpush2.msra.mxu0 0.0
      %1228 = vmatprep.subr.mxu0 0.0
      %1229 = vmatpush2.msra.mxu0 0.0
      %1230 = vmatprep.subr.mxu0 0.0
      %1231 = vmatpush2.msra.mxu0 0.0
      %1232 = vmatprep.subr.mxu0 0.0
      %1233 = vmatpush2.msra.mxu0 0.0
      %1234 = vmatprep.subr.mxu0 0.0
      %1235 = vmatpush2.msra.mxu0 0.0
      %1236 = vmatprep.subr.mxu0 0.0
      %1237 = vmatpush2.msra.mxu0 0.0
      %1238 = vmatprep.subr.mxu0 0.0
      %1239 = vmatpush2.msra.mxu0 0.0
      %1240 = vmatprep.mubr.f32.mxu0 0.0
      %1241 = vmatmul.mubr.f32.gmra.mxu0 %v1174
      %v1242 = vpop.f32.mrf.mxu0
      %v1243 = vadd.f32 %v1171, %v1242
      %v1244 = vpop.f32.mrf.mxu0
      %1245 = vdwg.mxu0
      %v1246 = vmul.f32 %v1243, 0.5
      %v1247 = vmul.f32 %v1243, 0.044715
      %v1248 = vmul.f32 %v1247, %v1243
      %v1249 = vmul.f32 %v1248, %v1243
      %v1250 = vadd.f32 %v1243, %v1249
      %v1251 = vmul.f32 %v1250, 0.7978846
      %v1252 = vtanh.pop %v1251
      %v1253 = vadd.f32 %v1252, 1.0
      %v1254 = vmul.f32 %v1246, %v1253
      %v1255 = vld [vmem:[%s12] sm:$0xff]
      %v1256 = vld [vmem:[%s12 + $0x8] sm:$0xff]
      %v1257 = vld [vmem:[%s12 + $0x10] sm:$0xff]
      %v1258 = vld [vmem:[%s12 + $0x18] sm:$0xff]
      %v1259 = vld [vmem:[%s12 + $0x20] sm:$0xff]
      %v1260 = vld [vmem:[%s12 + $0x28] sm:$0xff]
      %v1261 = vld [vmem:[%s12 + $0x30] sm:$0xff]
      %v1262 = vld [vmem:[%s12 + $0x38] sm:$0xff]
      %v1263 = vld [vmem:[%s13] sm:$0x1]
      %v1265 = vlaneseq
      %v1266 = vshrl.u32 %v1265, 7
      %v1267 = vsub.s32 0, %v1266
      %v1268 = vrot.slane %v1263, %v1267
      %vm1270 = vcmask 523264
      %v1272 = vsel %vm1270, %v1254, 0
      %1274 = vmatprep.subr.mxu0 0.0
      %1275 = vmatpush1.msra.mxu0 0.0
      %1276 = vmatprep.subr.mxu0 0.0
      %1277 = vmatpush1.msra.mxu0 0.0
      %1278 = vmatprep.subr.mxu0 0.0
      %1279 = vmatpush1.msra.mxu0 0.0
      %1280 = vmatprep.subr.mxu0 0.0
      %1281 = vmatpush1.msra.mxu0 0.0
      %1282 = vmatprep.subr.mxu0 0.0
      %1283 = vmatpush1.msra.mxu0 0.0
      %1284 = vmatprep.subr.mxu0 0.0
      %1285 = vmatpush1.msra.mxu0 0.0
      %1286 = vmatprep.subr.mxu0 0.0
      %1287 = vmatpush1.msra.mxu0 0.0
      %1288 = vmatprep.subr.mxu0 0.0
      %1289 = vmatpush1.msra.mxu0 0.0
      %1290 = vmatprep.subr.mxu0 0.0
      %1291 = vmatpush1.msra.mxu0 %v1262
      %1292 = vmatprep.subr.mxu0 0.0
      %1293 = vmatpush1.msra.mxu0 %v1261
      %1294 = vmatprep.subr.mxu0 0.0
      %1295 = vmatpush1.msra.mxu0 %v1260
      %1296 = vmatprep.subr.mxu0 0.0
      %1297 = vmatpush1.msra.mxu0 %v1259
      %1298 = vmatprep.subr.mxu0 0.0
      %1299 = vmatpush1.msra.mxu0 %v1258
      %1300 = vmatprep.subr.mxu0 0.0
      %1301 = vmatpush1.msra.mxu0 %v1257
      %1302 = vmatprep.subr.mxu0 0.0
      %1303 = vmatpush1.msra.mxu0 %v1256
      %1304 = vmatprep.subr.mxu0 0.0
      %1305 = vmatpush1.msra.mxu0 %v1255
      %1306 = vmatprep.subr.mxu0 0.0
      %1307 = vmatpush2.msra.mxu0 0.0
      %1308 = vmatprep.subr.mxu0 0.0
      %1309 = vmatpush2.msra.mxu0 0.0
      %1310 = vmatprep.subr.mxu0 0.0
      %1311 = vmatpush2.msra.mxu0 0.0
      %1312 = vmatprep.subr.mxu0 0.0
      %1313 = vmatpush2.msra.mxu0 0.0
      %1314 = vmatprep.subr.mxu0 0.0
      %1315 = vmatpush2.msra.mxu0 0.0
      %1316 = vmatprep.subr.mxu0 0.0
      %1317 = vmatpush2.msra.mxu0 0.0
      %1318 = vmatprep.subr.mxu0 0.0
      %1319 = vmatpush2.msra.mxu0 0.0
      %1320 = vmatprep.subr.mxu0 0.0
      %1321 = vmatpush2.msra.mxu0 0.0
      %1322 = vmatprep.subr.mxu0 0.0
      %1323 = vmatpush2.msra.mxu0 0.0
      %1324 = vmatprep.subr.mxu0 0.0
      %1325 = vmatpush2.msra.mxu0 0.0
      %1326 = vmatprep.subr.mxu0 0.0
      %1327 = vmatpush2.msra.mxu0 0.0
      %1328 = vmatprep.subr.mxu0 0.0
      %1329 = vmatpush2.msra.mxu0 0.0
      %1330 = vmatprep.subr.mxu0 0.0
      %1331 = vmatpush2.msra.mxu0 0.0
      %1332 = vmatprep.subr.mxu0 0.0
      %1333 = vmatpush2.msra.mxu0 0.0
      %1334 = vmatprep.subr.mxu0 0.0
      %1335 = vmatpush2.msra.mxu0 0.0
      %1336 = vmatprep.subr.mxu0 0.0
      %1337 = vmatpush2.msra.mxu0 0.0
      %1338 = vmatprep.mubr.f32.mxu0 0.0
      %1339 = vmatmul.mubr.f32.gmra.mxu0 %v1272
      %v1340 = vpop.f32.mrf.mxu0
      %v1341 = vadd.f32 %v1268, %v1340
      %v1342 = vpop.f32.mrf.mxu0
      %1343 = vdwg.mxu0
      %v1344 = vadd.f32 %v1161, %v1341
      %v1345 = vld [vmem:[%s14] sm:$0x1]
      %v1346 = vld [vmem:[%s15] sm:$0x1]
      %v1347 = vsel %vm589, %v1344, 0.0
      %1348 = vadd.xlane.f32.xlu0 %v1347
      %v1349 = vpop.xlane.xlu0 %1348
      %v1350 = vmul.f32 %v1349, %v593
      %v1351 = vsub.f32 %v1344, %v1350
      %v1352 = vmul.f32 %v1351, %v1351
      %v1353 = vsel %vm589, %v1352, 0.0
      %1354 = vadd.xlane.f32.xlu0 %v1353
      %v1355 = vpop.xlane.xlu0 %1354
      %v1356 = vmul.f32 %v1355, %v593
      %v1357 = vadd.f32 %v1356, 1e-05
      %v1358 = vrsqrt.pop %v1357
      %v1359 = vmul.f32 %v1351, %v1358
      %v1361 = vlaneseq
      %v1362 = vshrl.u32 %v1361, 7
      %v1363 = vsub.s32 0, %v1362
      %v1364 = vrot.slane %v1345, %v1363
      %v1366 = vmul.f32 %v1359, %v1364
      %v1368 = vlaneseq
      %v1369 = vshrl.u32 %v1368, 7
      %v1370 = vsub.s32 0, %v1369
      %v1371 = vrot.slane %v1346, %v1370
      %v1373 = vadd.f32 %v1366, %v1371
      %s1374 = scalar_lea.vmem %s4, 32
      %v1375 = vld [vmem:[%s1374] sm:$0xff]
      %v1376 = vld [vmem:[%s1374 + $0x8] sm:$0xff]
      %v1377 = vld [vmem:[%s1374 + $0x10] sm:$0xff]
      %v1378 = vld [vmem:[%s1374 + $0x18] sm:$0xff]
      %s1379 = scalar_lea.vmem %s5, 1
      %v1380 = vld [vmem:[%s1379] sm:$0x1]
      %v1382 = vlaneseq
      %v1383 = vshrl.u32 %v1382, 7
      %v1384 = vsub.s32 0, %v1383
      %v1385 = vrot.slane %v1380, %v1384
      %v1388 = vsel %vm589, %v1373, 0
      %1390 = vmatprep.subr.mxu0 0.0
      %1391 = vmatpush1.msra.mxu0 0.0
      %1392 = vmatprep.subr.mxu0 0.0
      %1393 = vmatpush1.msra.mxu0 0.0
      %1394 = vmatprep.subr.mxu0 0.0
      %1395 = vmatpush1.msra.mxu0 0.0
      %1396 = vmatprep.subr.mxu0 0.0
      %1397 = vmatpush1.msra.mxu0 0.0
      %1398 = vmatprep.subr.mxu0 0.0
      %1399 = vmatpush1.msra.mxu0 0.0
      %1400 = vmatprep.subr.mxu0 0.0
      %1401 = vmatpush1.msra.mxu0 0.0
      %1402 = vmatprep.subr.mxu0 0.0
      %1403 = vmatpush1.msra.mxu0 0.0
      %1404 = vmatprep.subr.mxu0 0.0
      %1405 = vmatpush1.msra.mxu0 0.0
      %1406 = vmatprep.subr.mxu0 0.0
      %1407 = vmatpush1.msra.mxu0 0.0
      %1408 = vmatprep.subr.mxu0 0.0
      %1409 = vmatpush1.msra.mxu0 0.0
      %1410 = vmatprep.subr.mxu0 0.0
      %1411 = vmatpush1.msra.mxu0 0.0
      %1412 = vmatprep.subr.mxu0 0.0
      %1413 = vmatpush1.msra.mxu0 0.0
      %1414 = vmatprep.subr.mxu0 0.0
      %1415 = vmatpush1.msra.mxu0 %v1378
      %1416 = vmatprep.subr.mxu0 0.0
      %1417 = vmatpush1.msra.mxu0 %v1377
      %1418 = vmatprep.subr.mxu0 0.0
      %1419 = vmatpush1.msra.mxu0 %v1376
      %1420 = vmatprep.subr.mxu0 0.0
      %1421 = vmatpush1.msra.mxu0 %v1375
      %1422 = vmatprep.subr.mxu0 0.0
      %1423 = vmatpush2.msra.mxu0 0.0
      %1424 = vmatprep.subr.mxu0 0.0
      %1425 = vmatpush2.msra.mxu0 0.0
      %1426 = vmatprep.subr.mxu0 0.0
      %1427 = vmatpush2.msra.mxu0 0.0
      %1428 = vmatprep.subr.mxu0 0.0
      %1429 = vmatpush2.msra.mxu0 0.0
      %1430 = vmatprep.subr.mxu0 0.0
      %1431 = vmatpush2.msra.mxu0 0.0
      %1432 = vmatprep.subr.mxu0 0.0
      %1433 = vmatpush2.msra.mxu0 0.0
      %1434 = vmatprep.subr.mxu0 0.0
      %1435 = vmatpush2.msra.mxu0 0.0
      %1436 = vmatprep.subr.mxu0 0.0
      %1437 = vmatpush2.msra.mxu0 0.0
      %1438 = vmatprep.subr.mxu0 0.0
      %1439 = vmatpush2.msra.mxu0 0.0
      %1440 = vmatprep.subr.mxu0 0.0
      %1441 = vmatpush2.msra.mxu0 0.0
      %1442 = vmatprep.subr.mxu0 0.0
      %1443 = vmatpush2.msra.mxu0 0.0
      %1444 = vmatprep.subr.mxu0 0.0
      %1445 = vmatpush2.msra.mxu0 0.0
      %1446 = vmatprep.subr.mxu0 0.0
      %1447 = vmatpush2.msra.mxu0 0.0
      %1448 = vmatprep.subr.mxu0 0.0
      %1449 = vmatpush2.msra.mxu0 0.0
      %1450 = vmatprep.subr.mxu0 0.0
      %1451 = vmatpush2.msra.mxu0 0.0
      %1452 = vmatprep.subr.mxu0 0.0
      %1453 = vmatpush2.msra.mxu0 0.0
      %1454 = vmatprep.mubr.f32.mxu0 0.0
      %1455 = vmatmul.mubr.f32.gmra.mxu0 %v1388
      %v1456 = vpop.f32.mrf.mxu0
      %v1457 = vadd.f32 %v1385, %v1456
      %v1458 = vpop.f32.mrf.mxu0
      %1459 = vdwg.mxu0
      %1461 = vrot.lane.b32.xlu0 %v1457, 96
      %v1462 = vpop.permute.xlu0 %1461
      %v1463 = vsel %vm705, %v1457, 0
      %v1465 = vsel %vm705, %v1462, 0
      %1467 = vmatprep.subr.mxu0 0.0
      %1468 = vmatpush1.xpose.msra.mxu0 0.0
      %1469 = vmatprep.subr.mxu0 0.0
      %1470 = vmatpush1.xpose.msra.mxu0 0.0
      %1471 = vmatprep.subr.mxu0 0.0
      %1472 = vmatpush1.xpose.msra.mxu0 0.0
      %1473 = vmatprep.subr.mxu0 0.0
      %1474 = vmatpush1.xpose.msra.mxu0 0.0
      %1475 = vmatprep.subr.mxu0 0.0
      %1476 = vmatpush1.xpose.msra.mxu0 0.0
      %1477 = vmatprep.subr.mxu0 0.0
      %1478 = vmatpush1.xpose.msra.mxu0 0.0
      %1479 = vmatprep.subr.mxu0 0.0
      %1480 = vmatpush1.xpose.msra.mxu0 0.0
      %1481 = vmatprep.subr.mxu0 0.0
      %1482 = vmatpush1.xpose.msra.mxu0 0.0
      %1483 = vmatprep.subr.mxu0 0.0
      %1484 = vmatpush1.xpose.msra.mxu0 0.0
      %1485 = vmatprep.subr.mxu0 0.0
      %1486 = vmatpush1.xpose.msra.mxu0 0.0
      %1487 = vmatprep.subr.mxu0 0.0
      %1488 = vmatpush1.xpose.msra.mxu0 0.0
      %1489 = vmatprep.subr.mxu0 0.0
      %1490 = vmatpush1.xpose.msra.mxu0 0.0
      %1491 = vmatprep.subr.mxu0 0.0
      %1492 = vmatpush1.xpose.msra.mxu0 0.0
      %1493 = vmatprep.subr.mxu0 0.0
      %1494 = vmatpush1.xpose.msra.mxu0 0.0
      %1495 = vmatprep.subr.mxu0 0.0
      %1496 = vmatpush1.xpose.msra.mxu0 0.0
      %1497 = vmatprep.subr.mxu0 0.0
      %1498 = vmatpush1.xpose.msra.mxu0 %v1465
      %1499 = vmatprep.subr.mxu0 0.0
      %1500 = vmatpush2.xpose.msra.mxu0 0.0
      %1501 = vmatprep.subr.mxu0 0.0
      %1502 = vmatpush2.xpose.msra.mxu0 0.0
      %1503 = vmatprep.subr.mxu0 0.0
      %1504 = vmatpush2.xpose.msra.mxu0 0.0
      %1505 = vmatprep.subr.mxu0 0.0
      %1506 = vmatpush2.xpose.msra.mxu0 0.0
      %1507 = vmatprep.subr.mxu0 0.0
      %1508 = vmatpush2.xpose.msra.mxu0 0.0
      %1509 = vmatprep.subr.mxu0 0.0
      %1510 = vmatpush2.xpose.msra.mxu0 0.0
      %1511 = vmatprep.subr.mxu0 0.0
      %1512 = vmatpush2.xpose.msra.mxu0 0.0
      %1513 = vmatprep.subr.mxu0 0.0
      %1514 = vmatpush2.xpose.msra.mxu0 0.0
      %1515 = vmatprep.subr.mxu0 0.0
      %1516 = vmatpush2.xpose.msra.mxu0 0.0
      %1517 = vmatprep.subr.mxu0 0.0
      %1518 = vmatpush2.xpose.msra.mxu0 0.0
      %1519 = vmatprep.subr.mxu0 0.0
      %1520 = vmatpush2.xpose.msra.mxu0 0.0
      %1521 = vmatprep.subr.mxu0 0.0
      %1522 = vmatpush2.xpose.msra.mxu0 0.0
      %1523 = vmatprep.subr.mxu0 0.0
      %1524 = vmatpush2.xpose.msra.mxu0 0.0
      %1525 = vmatprep.subr.mxu0 0.0
      %1526 = vmatpush2.xpose.msra.mxu0 0.0
      %1527 = vmatprep.subr.mxu0 0.0
      %1528 = vmatpush2.xpose.msra.mxu0 0.0
      %1529 = vmatprep.subr.mxu0 0.0
      %1530 = vmatpush2.xpose.msra.mxu0 0.0
      %1531 = vmatprep.mubr.f32.mxu0 0.0
      %1532 = vmatmul.mubr.f32.gmra.mxu0 %v1463
      %v1533 = vpop.f32.mrf.mxu0
      %v1534 = vadd.f32 0.0, %v1533
      %v1535 = vpop.f32.mrf.mxu0
      %1536 = vdwg.mxu0
      %v1537 = vmul.f32 %v1534, 0.25
      %v1538 = vadd.f32 %v1537, %v785
      %v1539 = vsel %vm788, %v1538, -inf
      %1540 = vmax.xlane.f32.xlu0 %v1539
      %v1541 = vpop.xlane.xlu0 %1540
      %v1542 = vsub.f32 %v1538, %v1541
      %v1543 = vmul.f32 %v1542, 1.442695
      %v1544 = vpow.pop %v1543
      %v1545 = vsel %vm788, %v1544, 0.0
      %1546 = vadd.xlane.f32.xlu0 %v1545
      %v1547 = vpop.xlane.xlu0 %1546
      %v1548 = vrcp.pop %v1547
      %v1549 = vmul.f32 %v1544, %v1548
      %1550 = vrot.lane.b32.xlu0 %v1457, 64
      %v1551 = vpop.permute.xlu0 %1550
      %v1554 = vsel %vm788, %v1549, 0
      %1556 = vmatprep.subr.mxu0 0.0
      %1557 = vmatpush1.msra.mxu0 0.0
      %1558 = vmatprep.subr.mxu0 0.0
      %1559 = vmatpush1.msra.mxu0 0.0
      %1560 = vmatprep.subr.mxu0 0.0
      %1561 = vmatpush1.msra.mxu0 0.0
      %1562 = vmatprep.subr.mxu0 0.0
      %1563 = vmatpush1.msra.mxu0 0.0
      %1564 = vmatprep.subr.mxu0 0.0
      %1565 = vmatpush1.msra.mxu0 0.0
      %1566 = vmatprep.subr.mxu0 0.0
      %1567 = vmatpush1.msra.mxu0 0.0
      %1568 = vmatprep.subr.mxu0 0.0
      %1569 = vmatpush1.msra.mxu0 0.0
      %1570 = vmatprep.subr.mxu0 0.0
      %1571 = vmatpush1.msra.mxu0 0.0
      %1572 = vmatprep.subr.mxu0 0.0
      %1573 = vmatpush1.msra.mxu0 0.0
      %1574 = vmatprep.subr.mxu0 0.0
      %1575 = vmatpush1.msra.mxu0 0.0
      %1576 = vmatprep.subr.mxu0 0.0
      %1577 = vmatpush1.msra.mxu0 0.0
      %1578 = vmatprep.subr.mxu0 0.0
      %1579 = vmatpush1.msra.mxu0 0.0
      %1580 = vmatprep.subr.mxu0 0.0
      %1581 = vmatpush1.msra.mxu0 0.0
      %1582 = vmatprep.subr.mxu0 0.0
      %1583 = vmatpush1.msra.mxu0 0.0
      %1584 = vmatprep.subr.mxu0 0.0
      %1585 = vmatpush1.msra.mxu0 0.0
      %1586 = vmatprep.subr.mxu0 0.0
      %1587 = vmatpush1.msra.mxu0 %v1551
      %1588 = vmatprep.subr.mxu0 0.0
      %1589 = vmatpush2.msra.mxu0 0.0
      %1590 = vmatprep.subr.mxu0 0.0
      %1591 = vmatpush2.msra.mxu0 0.0
      %1592 = vmatprep.subr.mxu0 0.0
      %1593 = vmatpush2.msra.mxu0 0.0
      %1594 = vmatprep.subr.mxu0 0.0
      %1595 = vmatpush2.msra.mxu0 0.0
      %1596 = vmatprep.subr.mxu0 0.0
      %1597 = vmatpush2.msra.mxu0 0.0
      %1598 = vmatprep.subr.mxu0 0.0
      %1599 = vmatpush2.msra.mxu0 0.0
      %1600 = vmatprep.subr.mxu0 0.0
      %1601 = vmatpush2.msra.mxu0 0.0
      %1602 = vmatprep.subr.mxu0 0.0
      %1603 = vmatpush2.msra.mxu0 0.0
      %1604 = vmatprep.subr.mxu0 0.0
      %1605 = vmatpush2.msra.mxu0 0.0
      %1606 = vmatprep.subr.mxu0 0.0
      %1607 = vmatpush2.msra.mxu0 0.0
      %1608 = vmatprep.subr.mxu0 0.0
      %1609 = vmatpush2.msra.mxu0 0.0
      %1610 = vmatprep.subr.mxu0 0.0
      %1611 = vmatpush2.msra.mxu0 0.0
      %1612 = vmatprep.subr.mxu0 0.0
      %1613 = vmatpush2.msra.mxu0 0.0
      %1614 = vmatprep.subr.mxu0 0.0
      %1615 = vmatpush2.msra.mxu0 0.0
      %1616 = vmatprep.subr.mxu0 0.0
      %1617 = vmatpush2.msra.mxu0 0.0
      %1618 = vmatprep.subr.mxu0 0.0
      %1619 = vmatpush2.msra.mxu0 0.0
      %1620 = vmatprep.mubr.f32.mxu0 0.0
      %1621 = vmatmul.mubr.f32.gmra.mxu0 %v1554
      %v1622 = vpop.f32.mrf.mxu0
      %v1623 = vadd.f32 0.0, %v1622
      %v1624 = vpop.f32.mrf.mxu0
      %1625 = vdwg.mxu0
      %1626 = vrot.lane.b32.xlu0 %v1457, 112
      %v1627 = vpop.permute.xlu0 %1626
      %1628 = vrot.lane.b32.xlu0 %v1457, 80
      %v1629 = vpop.permute.xlu0 %1628
      %v1630 = vsel %vm705, %v1627, 0
      %v1632 = vsel %vm705, %v1629, 0
      %1634 = vmatprep.subr.mxu0 0.0
      %1635 = vmatpush1.xpose.msra.mxu0 0.0
      %1636 = vmatprep.subr.mxu0 0.0
      %1637 = vmatpush1.xpose.msra.mxu0 0.0
      %1638 = vmatprep.subr.mxu0 0.0
      %1639 = vmatpush1.xpose.msra.mxu0 0.0
      %1640 = vmatprep.subr.mxu0 0.0
      %1641 = vmatpush1.xpose.msra.mxu0 0.0
      %1642 = vmatprep.subr.mxu0 0.0
      %1643 = vmatpush1.xpose.msra.mxu0 0.0
      %1644 = vmatprep.subr.mxu0 0.0
      %1645 = vmatpush1.xpose.msra.mxu0 0.0
      %1646 = vmatprep.subr.mxu0 0.0
      %1647 = vmatpush1.xpose.msra.mxu0 0.0
      %1648 = vmatprep.subr.mxu0 0.0
      %1649 = vmatpush1.xpose.msra.mxu0 0.0
      %1650 = vmatprep.subr.mxu0 0.0
      %1651 = vmatpush1.xpose.msra.mxu0 0.0
      %1652 = vmatprep.subr.mxu0 0.0
      %1653 = vmatpush1.xpose.msra.mxu0 0.0
      %1654 = vmatprep.subr.mxu0 0.0
      %1655 = vmatpush1.xpose.msra.mxu0 0.0
      %1656 = vmatprep.subr.mxu0 0.0
      %1657 = vmatpush1.xpose.msra.mxu0 0.0
      %1658 = vmatprep.subr.mxu0 0.0
      %1659 = vmatpush1.xpose.msra.mxu0 0.0
      %1660 = vmatprep.subr.mxu0 0.0
      %1661 = vmatpush1.xpose.msra.mxu0 0.0
      %1662 = vmatprep.subr.mxu0 0.0
      %1663 = vmatpush1.xpose.msra.mxu0 0.0
      %1664 = vmatprep.subr.mxu0 0.0
      %1665 = vmatpush1.xpose.msra.mxu0 %v1632
      %1666 = vmatprep.subr.mxu0 0.0
      %1667 = vmatpush2.xpose.msra.mxu0 0.0
      %1668 = vmatprep.subr.mxu0 0.0
      %1669 = vmatpush2.xpose.msra.mxu0 0.0
      %1670 = vmatprep.subr.mxu0 0.0
      %1671 = vmatpush2.xpose.msra.mxu0 0.0
      %1672 = vmatprep.subr.mxu0 0.0
      %1673 = vmatpush2.xpose.msra.mxu0 0.0
      %1674 = vmatprep.subr.mxu0 0.0
      %1675 = vmatpush2.xpose.msra.mxu0 0.0
      %1676 = vmatprep.subr.mxu0 0.0
      %1677 = vmatpush2.xpose.msra.mxu0 0.0
      %1678 = vmatprep.subr.mxu0 0.0
      %1679 = vmatpush2.xpose.msra.mxu0 0.0
      %1680 = vmatprep.subr.mxu0 0.0
      %1681 = vmatpush2.xpose.msra.mxu0 0.0
      %1682 = vmatprep.subr.mxu0 0.0
      %1683 = vmatpush2.xpose.msra.mxu0 0.0
      %1684 = vmatprep.subr.mxu0 0.0
      %1685 = vmatpush2.xpose.msra.mxu0 0.0
      %1686 = vmatprep.subr.mxu0 0.0
      %1687 = vmatpush2.xpose.msra.mxu0 0.0
      %1688 = vmatprep.subr.mxu0 0.0
      %1689 = vmatpush2.xpose.msra.mxu0 0.0
      %1690 = vmatprep.subr.mxu0 0.0
      %1691 = vmatpush2.xpose.msra.mxu0 0.0
      %1692 = vmatprep.subr.mxu0 0.0
      %1693 = vmatpush2.xpose.msra.mxu0 0.0
      %1694 = vmatprep.subr.mxu0 0.0
      %1695 = vmatpush2.xpose.msra.mxu0 0.0
      %1696 = vmatprep.subr.mxu0 0.0
      %1697 = vmatpush2.xpose.msra.mxu0 0.0
      %1698 = vmatprep.mubr.f32.mxu0 0.0
      %1699 = vmatmul.mubr.f32.gmra.mxu0 %v1630
      %v1700 = vpop.f32.mrf.mxu0
      %v1701 = vadd.f32 0.0, %v1700
      %v1702 = vpop.f32.mrf.mxu0
      %1703 = vdwg.mxu0
      %v1704 = vmul.f32 %v1701, 0.25
      %v1705 = vadd.f32 %v1704, %v785
      %v1706 = vsel %vm788, %v1705, -inf
      %1707 = vmax.xlane.f32.xlu0 %v1706
      %v1708 = vpop.xlane.xlu0 %1707
      %v1709 = vsub.f32 %v1705, %v1708
      %v1710 = vmul.f32 %v1709, 1.442695
      %v1711 = vpow.pop %v1710
      %v1712 = vsel %vm788, %v1711, 0.0
      %1713 = vadd.xlane.f32.xlu0 %v1712
      %v1714 = vpop.xlane.xlu0 %1713
      %v1715 = vrcp.pop %v1714
      %v1716 = vmul.f32 %v1711, %v1715
      %1717 = vrot.lane.b32.xlu0 %v1457, 48
      %v1718 = vpop.permute.xlu0 %1717
      %v1721 = vsel %vm788, %v1716, 0
      %1723 = vmatprep.subr.mxu0 0.0
      %1724 = vmatpush1.msra.mxu0 0.0
      %1725 = vmatprep.subr.mxu0 0.0
      %1726 = vmatpush1.msra.mxu0 0.0
      %1727 = vmatprep.subr.mxu0 0.0
      %1728 = vmatpush1.msra.mxu0 0.0
      %1729 = vmatprep.subr.mxu0 0.0
      %1730 = vmatpush1.msra.mxu0 0.0
      %1731 = vmatprep.subr.mxu0 0.0
      %1732 = vmatpush1.msra.mxu0 0.0
      %1733 = vmatprep.subr.mxu0 0.0
      %1734 = vmatpush1.msra.mxu0 0.0
      %1735 = vmatprep.subr.mxu0 0.0
      %1736 = vmatpush1.msra.mxu0 0.0
      %1737 = vmatprep.subr.mxu0 0.0
      %1738 = vmatpush1.msra.mxu0 0.0
      %1739 = vmatprep.subr.mxu0 0.0
      %1740 = vmatpush1.msra.mxu0 0.0
      %1741 = vmatprep.subr.mxu0 0.0
      %1742 = vmatpush1.msra.mxu0 0.0
      %1743 = vmatprep.subr.mxu0 0.0
      %1744 = vmatpush1.msra.mxu0 0.0
      %1745 = vmatprep.subr.mxu0 0.0
      %1746 = vmatpush1.msra.mxu0 0.0
      %1747 = vmatprep.subr.mxu0 0.0
      %1748 = vmatpush1.msra.mxu0 0.0
      %1749 = vmatprep.subr.mxu0 0.0
      %1750 = vmatpush1.msra.mxu0 0.0
      %1751 = vmatprep.subr.mxu0 0.0
      %1752 = vmatpush1.msra.mxu0 0.0
      %1753 = vmatprep.subr.mxu0 0.0
      %1754 = vmatpush1.msra.mxu0 %v1718
      %1755 = vmatprep.subr.mxu0 0.0
      %1756 = vmatpush2.msra.mxu0 0.0
      %1757 = vmatprep.subr.mxu0 0.0
      %1758 = vmatpush2.msra.mxu0 0.0
      %1759 = vmatprep.subr.mxu0 0.0
      %1760 = vmatpush2.msra.mxu0 0.0
      %1761 = vmatprep.subr.mxu0 0.0
      %1762 = vmatpush2.msra.mxu0 0.0
      %1763 = vmatprep.subr.mxu0 0.0
      %1764 = vmatpush2.msra.mxu0 0.0
      %1765 = vmatprep.subr.mxu0 0.0
      %1766 = vmatpush2.msra.mxu0 0.0
      %1767 = vmatprep.subr.mxu0 0.0
      %1768 = vmatpush2.msra.mxu0 0.0
      %1769 = vmatprep.subr.mxu0 0.0
      %1770 = vmatpush2.msra.mxu0 0.0
      %1771 = vmatprep.subr.mxu0 0.0
      %1772 = vmatpush2.msra.mxu0 0.0
      %1773 = vmatprep.subr.mxu0 0.0
      %1774 = vmatpush2.msra.mxu0 0.0
      %1775 = vmatprep.subr.mxu0 0.0
      %1776 = vmatpush2.msra.mxu0 0.0
      %1777 = vmatprep.subr.mxu0 0.0
      %1778 = vmatpush2.msra.mxu0 0.0
      %1779 = vmatprep.subr.mxu0 0.0
      %1780 = vmatpush2.msra.mxu0 0.0
      %1781 = vmatprep.subr.mxu0 0.0
      %1782 = vmatpush2.msra.mxu0 0.0
      %1783 = vmatprep.subr.mxu0 0.0
      %1784 = vmatpush2.msra.mxu0 0.0
      %1785 = vmatprep.subr.mxu0 0.0
      %1786 = vmatpush2.msra.mxu0 0.0
      %1787 = vmatprep.mubr.f32.mxu0 0.0
      %1788 = vmatmul.mubr.f32.gmra.mxu0 %v1721
      %v1789 = vpop.f32.mrf.mxu0
      %v1790 = vadd.f32 0.0, %v1789
      %v1791 = vpop.f32.mrf.mxu0
      %1792 = vdwg.mxu0
      %1794 = vrot.lane.b32.xlu0 %v1790, 16
      %v1795 = vpop.permute.xlu0 %1794
      %v1797 = vsel %vm705, %v1623, %v1795
      %s1798 = scalar_lea.vmem %s6, 32
      %v1799 = vld [vmem:[%s1798] sm:$0xff]
      %v1800 = vld [vmem:[%s1798 + $0x8] sm:$0xff]
      %v1801 = vld [vmem:[%s1798 + $0x10] sm:$0xff]
      %v1802 = vld [vmem:[%s1798 + $0x18] sm:$0xff]
      %s1803 = scalar_lea.vmem %s7, 1
      %v1804 = vld [vmem:[%s1803] sm:$0x1]
      %v1806 = vlaneseq
      %v1807 = vshrl.u32 %v1806, 7
      %v1808 = vsub.s32 0, %v1807
      %v1809 = vrot.slane %v1804, %v1808
      %v1812 = vsel %vm589, %v1797, 0
      %1814 = vmatprep.subr.mxu0 0.0
      %1815 = vmatpush1.msra.mxu0 0.0
      %1816 = vmatprep.subr.mxu0 0.0
      %1817 = vmatpush1.msra.mxu0 0.0
      %1818 = vmatprep.subr.mxu0 0.0
      %1819 = vmatpush1.msra.mxu0 0.0
      %1820 = vmatprep.subr.mxu0 0.0
      %1821 = vmatpush1.msra.mxu0 0.0
      %1822 = vmatprep.subr.mxu0 0.0
      %1823 = vmatpush1.msra.mxu0 0.0
      %1824 = vmatprep.subr.mxu0 0.0
      %1825 = vmatpush1.msra.mxu0 0.0
      %1826 = vmatprep.subr.mxu0 0.0
      %1827 = vmatpush1.msra.mxu0 0.0
      %1828 = vmatprep.subr.mxu0 0.0
      %1829 = vmatpush1.msra.mxu0 0.0
      %1830 = vmatprep.subr.mxu0 0.0
      %1831 = vmatpush1.msra.mxu0 0.0
      %1832 = vmatprep.subr.mxu0 0.0
      %1833 = vmatpush1.msra.mxu0 0.0
      %1834 = vmatprep.subr.mxu0 0.0
      %1835 = vmatpush1.msra.mxu0 0.0
      %1836 = vmatprep.subr.mxu0 0.0
      %1837 = vmatpush1.msra.mxu0 0.0
      %1838 = vmatprep.subr.mxu0 0.0
      %1839 = vmatpush1.msra.mxu0 %v1802
      %1840 = vmatprep.subr.mxu0 0.0
      %1841 = vmatpush1.msra.mxu0 %v1801
      %1842 = vmatprep.subr.mxu0 0.0
      %1843 = vmatpush1.msra.mxu0 %v1800
      %1844 = vmatprep.subr.mxu0 0.0
      %1845 = vmatpush1.msra.mxu0 %v1799
      %1846 = vmatprep.subr.mxu0 0.0
      %1847 = vmatpush2.msra.mxu0 0.0
      %1848 = vmatprep.subr.mxu0 0.0
      %1849 = vmatpush2.msra.mxu0 0.0
      %1850 = vmatprep.subr.mxu0 0.0
      %1851 = vmatpush2.msra.mxu0 0.0
      %1852 = vmatprep.subr.mxu0 0.0
      %1853 = vmatpush2.msra.mxu0 0.0
      %1854 = vmatprep.subr.mxu0 0.0
      %1855 = vmatpush2.msra.mxu0 0.0
      %1856 = vmatprep.subr.mxu0 0.0
      %1857 = vmatpush2.msra.mxu0 0.0
      %1858 = vmatprep.subr.mxu0 0.0
      %1859 = vmatpush2.msra.mxu0 0.0
      %1860 = vmatprep.subr.mxu0 0.0
      %1861 = vmatpush2.msra.mxu0 0.0
      %1862 = vmatprep.subr.mxu0 0.0
      %1863 = vmatpush2.msra.mxu0 0.0
      %1864 = vmatprep.subr.mxu0 0.0
      %1865 = vmatpush2.msra.mxu0 0.0
      %1866 = vmatprep.subr.mxu0 0.0
      %1867 = vmatpush2.msra.mxu0 0.0
      %1868 = vmatprep.subr.mxu0 0.0
      %1869 = vmatpush2.msra.mxu0 0.0
      %1870 = vmatprep.subr.mxu0 0.0
      %1871 = vmatpush2.msra.mxu0 0.0
      %1872 = vmatprep.subr.mxu0 0.0
      %1873 = vmatpush2.msra.mxu0 0.0
      %1874 = vmatprep.subr.mxu0 0.0
      %1875 = vmatpush2.msra.mxu0 0.0
      %1876 = vmatprep.subr.mxu0 0.0
      %1877 = vmatpush2.msra.mxu0 0.0
      %1878 = vmatprep.mubr.f32.mxu0 0.0
      %1879 = vmatmul.mubr.f32.gmra.mxu0 %v1812
      %v1880 = vpop.f32.mrf.mxu0
      %v1881 = vadd.f32 %v1809, %v1880
      %v1882 = vpop.f32.mrf.mxu0
      %1883 = vdwg.mxu0
      %v1884 = vadd.f32 %v1373, %v1881
      %s1885 = scalar_lea.vmem %s8, 1
      %v1886 = vld [vmem:[%s1885] sm:$0x1]
      %s1887 = scalar_lea.vmem %s9, 1
      %v1888 = vld [vmem:[%s1887] sm:$0x1]
      %v1889 = vsel %vm589, %v1884, 0.0
      %1890 = vadd.xlane.f32.xlu0 %v1889
      %v1891 = vpop.xlane.xlu0 %1890
      %v1892 = vmul.f32 %v1891, %v593
      %v1893 = vsub.f32 %v1884, %v1892
      %v1894 = vmul.f32 %v1893, %v1893
      %v1895 = vsel %vm589, %v1894, 0.0
      %1896 = vadd.xlane.f32.xlu0 %v1895
      %v1897 = vpop.xlane.xlu0 %1896
      %v1898 = vmul.f32 %v1897, %v593
      %v1899 = vadd.f32 %v1898, 1e-05
      %v1900 = vrsqrt.pop %v1899
      %v1901 = vmul.f32 %v1893, %v1900
      %v1903 = vlaneseq
      %v1904 = vshrl.u32 %v1903, 7
      %v1905 = vsub.s32 0, %v1904
      %v1906 = vrot.slane %v1886, %v1905
      %v1908 = vmul.f32 %v1901, %v1906
      %v1910 = vlaneseq
      %v1911 = vshrl.u32 %v1910, 7
      %v1912 = vsub.s32 0, %v1911
      %v1913 = vrot.slane %v1888, %v1912
      %v1915 = vadd.f32 %v1908, %v1913
      %s1916 = scalar_lea.vmem %s10, 32
      %v1917 = vld [vmem:[%s1916] sm:$0xff]
      %v1918 = vld [vmem:[%s1916 + $0x8] sm:$0xff]
      %v1919 = vld [vmem:[%s1916 + $0x10] sm:$0xff]
      %v1920 = vld [vmem:[%s1916 + $0x18] sm:$0xff]
      %s1921 = scalar_lea.vmem %s11, 1
      %v1922 = vld [vmem:[%s1921] sm:$0x1]
      %v1924 = vlaneseq
      %v1925 = vshrl.u32 %v1924, 7
      %v1926 = vsub.s32 0, %v1925
      %v1927 = vrot.slane %v1922, %v1926
      %v1930 = vsel %vm589, %v1915, 0
      %1932 = vmatprep.subr.mxu0 0.0
      %1933 = vmatpush1.msra.mxu0 0.0
      %1934 = vmatprep.subr.mxu0 0.0
      %1935 = vmatpush1.msra.mxu0 0.0
      %1936 = vmatprep.subr.mxu0 0.0
      %1937 = vmatpush1.msra.mxu0 0.0
      %1938 = vmatprep.subr.mxu0 0.0
      %1939 = vmatpush1.msra.mxu0 0.0
      %1940 = vmatprep.subr.mxu0 0.0
      %1941 = vmatpush1.msra.mxu0 0.0
      %1942 = vmatprep.subr.mxu0 0.0
      %1943 = vmatpush1.msra.mxu0 0.0
      %1944 = vmatprep.subr.mxu0 0.0
      %1945 = vmatpush1.msra.mxu0 0.0
      %1946 = vmatprep.subr.mxu0 0.0
      %1947 = vmatpush1.msra.mxu0 0.0
      %1948 = vmatprep.subr.mxu0 0.0
      %1949 = vmatpush1.msra.mxu0 0.0
      %1950 = vmatprep.subr.mxu0 0.0
      %1951 = vmatpush1.msra.mxu0 0.0
      %1952 = vmatprep.subr.mxu0 0.0
      %1953 = vmatpush1.msra.mxu0 0.0
      %1954 = vmatprep.subr.mxu0 0.0
      %1955 = vmatpush1.msra.mxu0 0.0
      %1956 = vmatprep.subr.mxu0 0.0
      %1957 = vmatpush1.msra.mxu0 %v1920
      %1958 = vmatprep.subr.mxu0 0.0
      %1959 = vmatpush1.msra.mxu0 %v1919
      %1960 = vmatprep.subr.mxu0 0.0
      %1961 = vmatpush1.msra.mxu0 %v1918
      %1962 = vmatprep.subr.mxu0 0.0
      %1963 = vmatpush1.msra.mxu0 %v1917
      %1964 = vmatprep.subr.mxu0 0.0
      %1965 = vmatpush2.msra.mxu0 0.0
      %1966 = vmatprep.subr.mxu0 0.0
      %1967 = vmatpush2.msra.mxu0 0.0
      %1968 = vmatprep.subr.mxu0 0.0
      %1969 = vmatpush2.msra.mxu0 0.0
      %1970 = vmatprep.subr.mxu0 0.0
      %1971 = vmatpush2.msra.mxu0 0.0
      %1972 = vmatprep.subr.mxu0 0.0
      %1973 = vmatpush2.msra.mxu0 0.0
      %1974 = vmatprep.subr.mxu0 0.0
      %1975 = vmatpush2.msra.mxu0 0.0
      %1976 = vmatprep.subr.mxu0 0.0
      %1977 = vmatpush2.msra.mxu0 0.0
      %1978 = vmatprep.subr.mxu0 0.0
      %1979 = vmatpush2.msra.mxu0 0.0
      %1980 = vmatprep.subr.mxu0 0.0
      %1981 = vmatpush2.msra.mxu0 0.0
      %1982 = vmatprep.subr.mxu0 0.0
      %1983 = vmatpush2.msra.mxu0 0.0
      %1984 = vmatprep.subr.mxu0 0.0
      %1985 = vmatpush2.msra.mxu0 0.0
      %1986 = vmatprep.subr.mxu0 0.0
      %1987 = vmatpush2.msra.mxu0 0.0
      %1988 = vmatprep.subr.mxu0 0.0
      %1989 = vmatpush2.msra.mxu0 0.0
      %1990 = vmatprep.subr.mxu0 0.0
      %1991 = vmatpush2.msra.mxu0 0.0
      %1992 = vmatprep.subr.mxu0 0.0
      %1993 = vmatpush2.msra.mxu0 0.0
      %1994 = vmatprep.subr.mxu0 0.0
      %1995 = vmatpush2.msra.mxu0 0.0
      %1996 = vmatprep.mubr.f32.mxu0 0.0
      %1997 = vmatmul.mubr.f32.gmra.mxu0 %v1930
      %v1998 = vpop.f32.mrf.mxu0
      %v1999 = vadd.f32 %v1927, %v1998
      %v2000 = vpop.f32.mrf.mxu0
      %2001 = vdwg.mxu0
      %v2002 = vmul.f32 %v1999, 0.5
      %v2003 = vmul.f32 %v1999, 0.044715
      %v2004 = vmul.f32 %v2003, %v1999
      %v2005 = vmul.f32 %v2004, %v1999
      %v2006 = vadd.f32 %v1999, %v2005
      %v2007 = vmul.f32 %v2006, 0.7978846
      %v2008 = vtanh.pop %v2007
      %v2009 = vadd.f32 %v2008, 1.0
      %v2010 = vmul.f32 %v2002, %v2009
      %s2011 = scalar_lea.vmem %s12, 64
      %v2012 = vld [vmem:[%s2011] sm:$0xff]
      %v2013 = vld [vmem:[%s2011 + $0x8] sm:$0xff]
      %v2014 = vld [vmem:[%s2011 + $0x10] sm:$0xff]
      %v2015 = vld [vmem:[%s2011 + $0x18] sm:$0xff]
      %v2016 = vld [vmem:[%s2011 + $0x20] sm:$0xff]
      %v2017 = vld [vmem:[%s2011 + $0x28] sm:$0xff]
      %v2018 = vld [vmem:[%s2011 + $0x30] sm:$0xff]
      %v2019 = vld [vmem:[%s2011 + $0x38] sm:$0xff]
      %s2020 = scalar_lea.vmem %s13, 1
      %v2021 = vld [vmem:[%s2020] sm:$0x1]
      %v2023 = vlaneseq
      %v2024 = vshrl.u32 %v2023, 7
      %v2025 = vsub.s32 0, %v2024
      %v2026 = vrot.slane %v2021, %v2025
      %v2029 = vsel %vm1270, %v2010, 0
      %2031 = vmatprep.subr.mxu0 0.0
      %2032 = vmatpush1.msra.mxu0 0.0
      %2033 = vmatprep.subr.mxu0 0.0
      %2034 = vmatpush1.msra.mxu0 0.0
      %2035 = vmatprep.subr.mxu0 0.0
      %2036 = vmatpush1.msra.mxu0 0.0
      %2037 = vmatprep.subr.mxu0 0.0
      %2038 = vmatpush1.msra.mxu0 0.0
      %2039 = vmatprep.subr.mxu0 0.0
      %2040 = vmatpush1.msra.mxu0 0.0
      %2041 = vmatprep.subr.mxu0 0.0
      %2042 = vmatpush1.msra.mxu0 0.0
      %2043 = vmatprep.subr.mxu0 0.0
      %2044 = vmatpush1.msra.mxu0 0.0
      %2045 = vmatprep.subr.mxu0 0.0
      %2046 = vmatpush1.msra.mxu0 0.0
      %2047 = vmatprep.subr.mxu0 0.0
      %2048 = vmatpush1.msra.mxu0 %v2019
      %2049 = vmatprep.subr.mxu0 0.0
      %2050 = vmatpush1.msra.mxu0 %v2018
      %2051 = vmatprep.subr.mxu0 0.0
      %2052 = vmatpush1.msra.mxu0 %v2017
      %2053 = vmatprep.subr.mxu0 0.0
      %2054 = vmatpush1.msra.mxu0 %v2016
      %2055 = vmatprep.subr.mxu0 0.0
      %2056 = vmatpush1.msra.mxu0 %v2015
      %2057 = vmatprep.subr.mxu0 0.0
      %2058 = vmatpush1.msra.mxu0 %v2014
      %2059 = vmatprep.subr.mxu0 0.0
      %2060 = vmatpush1.msra.mxu0 %v2013
      %2061 = vmatprep.subr.mxu0 0.0
      %2062 = vmatpush1.msra.mxu0 %v2012
      %2063 = vmatprep.subr.mxu0 0.0
      %2064 = vmatpush2.msra.mxu0 0.0
      %2065 = vmatprep.subr.mxu0 0.0
      %2066 = vmatpush2.msra.mxu0 0.0
      %2067 = vmatprep.subr.mxu0 0.0
      %2068 = vmatpush2.msra.mxu0 0.0
      %2069 = vmatprep.subr.mxu0 0.0
      %2070 = vmatpush2.msra.mxu0 0.0
      %2071 = vmatprep.subr.mxu0 0.0
      %2072 = vmatpush2.msra.mxu0 0.0
      %2073 = vmatprep.subr.mxu0 0.0
      %2074 = vmatpush2.msra.mxu0 0.0
      %2075 = vmatprep.subr.mxu0 0.0
      %2076 = vmatpush2.msra.mxu0 0.0
      %2077 = vmatprep.subr.mxu0 0.0
      %2078 = vmatpush2.msra.mxu0 0.0
      %2079 = vmatprep.subr.mxu0 0.0
      %2080 = vmatpush2.msra.mxu0 0.0
      %2081 = vmatprep.subr.mxu0 0.0
      %2082 = vmatpush2.msra.mxu0 0.0
      %2083 = vmatprep.subr.mxu0 0.0
      %2084 = vmatpush2.msra.mxu0 0.0
      %2085 = vmatprep.subr.mxu0 0.0
      %2086 = vmatpush2.msra.mxu0 0.0
      %2087 = vmatprep.subr.mxu0 0.0
      %2088 = vmatpush2.msra.mxu0 0.0
      %2089 = vmatprep.subr.mxu0 0.0
      %2090 = vmatpush2.msra.mxu0 0.0
      %2091 = vmatprep.subr.mxu0 0.0
      %2092 = vmatpush2.msra.mxu0 0.0
      %2093 = vmatprep.subr.mxu0 0.0
      %2094 = vmatpush2.msra.mxu0 0.0
      %2095 = vmatprep.mubr.f32.mxu0 0.0
      %2096 = vmatmul.mubr.f32.gmra.mxu0 %v2029
      %v2097 = vpop.f32.mrf.mxu0
      %v2098 = vadd.f32 %v2026, %v2097
      %v2099 = vpop.f32.mrf.mxu0
      %2100 = vdwg.mxu0
      %v2101 = vadd.f32 %v1915, %v2098
      %s2102 = scalar_lea.vmem %s14, 1
      %v2103 = vld [vmem:[%s2102] sm:$0x1]
      %s2104 = scalar_lea.vmem %s15, 1
      %v2105 = vld [vmem:[%s2104] sm:$0x1]
      %v2106 = vsel %vm589, %v2101, 0.0
      %2107 = vadd.xlane.f32.xlu0 %v2106
      %v2108 = vpop.xlane.xlu0 %2107
      %v2109 = vmul.f32 %v2108, %v593
      %v2110 = vsub.f32 %v2101, %v2109
      %v2111 = vmul.f32 %v2110, %v2110
      %v2112 = vsel %vm589, %v2111, 0.0
      %2113 = vadd.xlane.f32.xlu0 %v2112
      %v2114 = vpop.xlane.xlu0 %2113
      %v2115 = vmul.f32 %v2114, %v593
      %v2116 = vadd.f32 %v2115, 1e-05
      %v2117 = vrsqrt.pop %v2116
      %v2118 = vmul.f32 %v2110, %v2117
      %v2120 = vlaneseq
      %v2121 = vshrl.u32 %v2120, 7
      %v2122 = vsub.s32 0, %v2121
      %v2123 = vrot.slane %v2103, %v2122
      %v2125 = vmul.f32 %v2118, %v2123
      %v2127 = vlaneseq
      %v2128 = vshrl.u32 %v2127, 7
      %v2129 = vsub.s32 0, %v2128
      %v2130 = vrot.slane %v2105, %v2129
      %v2132 = vadd.f32 %v2125, %v2130
      %v2133 = vld [vmem:[%s16] sm:$0xff]
      %v2134 = vld [vmem:[%s16 + $0x8] sm:$0xff]
      %v2135 = vld [vmem:[%s16 + $0x10] sm:$0xff]
      %v2136 = vld [vmem:[%s16 + $0x18] sm:$0xff]
      %v2137 = vld [vmem:[%s17] sm:$0x1]
      %v2139 = vlaneseq
      %v2140 = vshrl.u32 %v2139, 7
      %v2141 = vsub.s32 0, %v2140
      %v2142 = vrot.slane %v2137, %v2141
      %v2145 = vsel %vm589, %v2132, 0
      %2147 = vmatprep.subr.mxu0 0.0
      %2148 = vmatpush1.msra.mxu0 0.0
      %2149 = vmatprep.subr.mxu0 0.0
      %2150 = vmatpush1.msra.mxu0 0.0
      %2151 = vmatprep.subr.mxu0 0.0
      %2152 = vmatpush1.msra.mxu0 0.0
      %2153 = vmatprep.subr.mxu0 0.0
      %2154 = vmatpush1.msra.mxu0 0.0
      %2155 = vmatprep.subr.mxu0 0.0
      %2156 = vmatpush1.msra.mxu0 0.0
      %2157 = vmatprep.subr.mxu0 0.0
      %2158 = vmatpush1.msra.mxu0 0.0
      %2159 = vmatprep.subr.mxu0 0.0
      %2160 = vmatpush1.msra.mxu0 0.0
      %2161 = vmatprep.subr.mxu0 0.0
      %2162 = vmatpush1.msra.mxu0 0.0
      %2163 = vmatprep.subr.mxu0 0.0
      %2164 = vmatpush1.msra.mxu0 0.0
      %2165 = vmatprep.subr.mxu0 0.0
      %2166 = vmatpush1.msra.mxu0 0.0
      %2167 = vmatprep.subr.mxu0 0.0
      %2168 = vmatpush1.msra.mxu0 0.0
      %2169 = vmatprep.subr.mxu0 0.0
      %2170 = vmatpush1.msra.mxu0 0.0
      %2171 = vmatprep.subr.mxu0 0.0
      %2172 = vmatpush1.msra.mxu0 %v2136
      %2173 = vmatprep.subr.mxu0 0.0
      %2174 = vmatpush1.msra.mxu0 %v2135
      %2175 = vmatprep.subr.mxu0 0.0
      %2176 = vmatpush1.msra.mxu0 %v2134
      %2177 = vmatprep.subr.mxu0 0.0
      %2178 = vmatpush1.msra.mxu0 %v2133
      %2179 = vmatprep.subr.mxu0 0.0
      %2180 = vmatpush2.msra.mxu0 0.0
      %2181 = vmatprep.subr.mxu0 0.0
      %2182 = vmatpush2.msra.mxu0 0.0
      %2183 = vmatprep.subr.mxu0 0.0
      %2184 = vmatpush2.msra.mxu0 0.0
      %2185 = vmatprep.subr.mxu0 0.0
      %2186 = vmatpush2.msra.mxu0 0.0
      %2187 = vmatprep.subr.mxu0 0.0
      %2188 = vmatpush2.msra.mxu0 0.0
      %2189 = vmatprep.subr.mxu0 0.0
      %2190 = vmatpush2.msra.mxu0 0.0
      %2191 = vmatprep.subr.mxu0 0.0
      %2192 = vmatpush2.msra.mxu0 0.0
      %2193 = vmatprep.subr.mxu0 0.0
      %2194 = vmatpush2.msra.mxu0 0.0
      %2195 = vmatprep.subr.mxu0 0.0
      %2196 = vmatpush2.msra.mxu0 0.0
      %2197 = vmatprep.subr.mxu0 0.0
      %2198 = vmatpush2.msra.mxu0 0.0
      %2199 = vmatprep.subr.mxu0 0.0
      %2200 = vmatpush2.msra.mxu0 0.0
      %2201 = vmatprep.subr.mxu0 0.0
      %2202 = vmatpush2.msra.mxu0 0.0
      %2203 = vmatprep.subr.mxu0 0.0
      %2204 = vmatpush2.msra.mxu0 0.0
      %2205 = vmatprep.subr.mxu0 0.0
      %2206 = vmatpush2.msra.mxu0 0.0
      %2207 = vmatprep.subr.mxu0 0.0
      %2208 = vmatpush2.msra.mxu0 0.0
      %2209 = vmatprep.subr.mxu0 0.0
      %2210 = vmatpush2.msra.mxu0 0.0
      %2211 = vmatprep.mubr.f32.mxu0 0.0
      %2212 = vmatmul.mubr.f32.gmra.mxu0 %v2145
      %v2213 = vpop.f32.mrf.mxu0
      %v2214 = vadd.f32 %v2142, %v2213
      %v2215 = vpop.f32.mrf.mxu0
      %2216 = vdwg.mxu0
      %2217 = vst [vmem:[%s584] sm:$0xff] %v2214
      %p2218 = scmp.lt.s32.totalorder %s29, 1
      %s2219 = scalar_select %p2218, %s29, 1
      %s2220 = smul.addr %s2219, 8
      %s2221 = scalar_lea.vmem %s18, %s2220
      // Predicated region
      $region93: #{token_classification_forward.1} parent=91 // pred_check
        %p2222 = pneg %p435
      $region94: #{token_classification_forward.1} parent=91 // pred_check_branch
        %2224 = sbr.rel (%p2222) target = $region96
      $region95: #{token_classification_forward.1} parent=91 // pred_region
        _
      $region96: #{token_classification_forward.1} parent=91 // pred_fallthru
        _
    $region92: #{token_classification_forward.1} parent=5 // pred_fallthru
      _
    %p2225 = scmp.le.s32.totalorder 2, %s24
    // Predicated region
    $region97: #{token_classification_forward.1} parent=5 // pred_check
      %p2226 = pneg %p2225
    $region98: #{token_classification_forward.1} parent=5 // pred_check_branch
      %2228 = sbr.rel (%p2226) target = $region100
    $region99: #{token_classification_forward.1} parent=5 // pred_region
      %s2229 = ssub.s32 %s24, 2
      // Predicated region
      $region101: #{token_classification_forward.1} parent=99 // pred_check
        %p2230 = pneg %p441
      $region102: #{token_classification_forward.1} parent=99 // pred_check_branch
        %2232 = sbr.rel (%p2230) target = $region104
      $region103: #{token_classification_forward.1} parent=99 // pred_region
        %p2233 = scmp.lt.s32.totalorder %s30, 1
        %s2234 = scalar_select %p2233, %s30, 1
        %s2235 = smul.addr %s2234, 8
        %s2236 = scalar_lea.vmem %s18, %s2235
      $region104: #{token_classification_forward.1} parent=99 // pred_fallthru
        _
    $region100: #{token_classification_forward.1} parent=5 // pred_fallthru
      _
  $region6: #{token_classification_forward.1} parent=0 // loop_footer
    %s28 = sadd.s32 1, %s24
  $region7: #{token_classification_forward.1} parent=0 // loop_footer_branch
    %23 = sbr.rel target = $region3
  $region8: #{token_classification_forward.1} parent=0 // loop_exit
    _

</llo_original>
